<compile_context>
chip_gen: v7x
topology: tpu7x:2x2x1
jax: 0.10.0
libtpu: 0.0.40
codegen_flags: <defaults>
</compile_context>

<pallas_src>
import functools

import jax
import jax.numpy as jnp
from jax.experimental import pallas as pl
from jax.experimental.pallas import tpu as pltpu


# --------------------------------------------------------------------------------------
# Shared helpers
# --------------------------------------------------------------------------------------
def _round_up(x, m):
    return ((x + m - 1) // m) * m


def _layernorm(x, w, b, eps=1e-6):
    # x: (N, D) f32 ; w, b: (1, D) f32
    mu = jnp.mean(x, axis=-1, keepdims=True)
    xc = x - mu
    var = jnp.mean(xc * xc, axis=-1, keepdims=True)
    return xc * jax.lax.rsqrt(var + eps) * w + b


def extract_patches(img, patch_size):
    """(B, C, H, W) -> (B, n_patches, C*p*p); equivalent to the stride-p conv's im2col."""
    B, C, H, W = img.shape
    nh, nw = H // patch_size, W // patch_size
    x = img.reshape(B, C, nh, patch_size, nw, patch_size)
    x = x.transpose(0, 2, 4, 1, 3, 5)
    return x.reshape(B, nh * nw, C * patch_size * patch_size)


# --------------------------------------------------------------------------------------
# Transformer block kernel: LN1 -> MHSA -> +res -> LN2 -> MLP(GELU) -> +res
# Grid: (batch_blocks,)  ["parallel"]
# --------------------------------------------------------------------------------------
def block_kernel(x_ref,
                 ln1_w_ref, ln1_b_ref,
                 qkvw_ref, qkvb_ref,          # fused: (D, 3D), (1, 3D)
                 projw_ref, projb_ref,        # (D, D), (1, D)
                 ln2_w_ref, ln2_b_ref,
                 fc1w_ref, fc1b_ref, fc2w_ref, fc2b_ref,
                 o_ref,
                 *, n_heads, n_tokens, precision, approx_recip):
    bb, tp, d = x_ref.shape
    hd = d // n_heads
    n = bb * tp
    cdt = qkvw_ref.dtype

    x = x_ref[...].reshape(n, d)                                        # f32
    xn = _layernorm(x, ln1_w_ref[...], ln1_b_ref[...]).astype(cdt)

    # One lane-dense QKV matmul for all heads; softmax scale folded into Q cols on host.
    qkv = jnp.dot(xn, qkvw_ref[...], preferred_element_type=jnp.float32,
                  precision=precision) + qkvb_ref[...]                  # (n, 3D) f32

    key_mask = None
    if n_tokens < tp:  # mask padded key tokens (static condition)
        key_pos = jax.lax.broadcasted_iota(jnp.int32, (1, 1, tp), 2)
        key_mask = key_pos < n_tokens

    # Per-head attention on static column slices of the fused QKV result.
    # NOTE: with real ViT sequence lengths (~200 tokens) the softmax is lane-dense;
    # for toy Tp this part is lane-sparse but negligible vs the matmuls.
    ctx_heads = []
    for h in range(n_heads):                          # static loop, static slices
        q = qkv[:, h * hd:(h + 1) * hd].reshape(bb, tp, hd).astype(cdt)
        k = qkv[:, d + h * hd:d + (h + 1) * hd].reshape(bb, tp, hd).astype(cdt)
        v = qkv[:, 2 * d + h * hd:2 * d + (h + 1) * hd].reshape(bb, tp, hd).astype(cdt)
        s = jnp.einsum("bqd,bkd->bqk", q, k, preferred_element_type=jnp.float32,
                       precision=precision)                             # (bb, tp, tp)
        if key_mask is not None:
            s = jnp.where(key_mask, s, -1e30)
        m = jnp.max(s, axis=-1, keepdims=True)
        p = jnp.exp(s - m)
        denom = jnp.sum(p, axis=-1, keepdims=True)
        attn = (p * pl.reciprocal(denom, approx=approx_recip)).astype(cdt)
        ctx = jnp.einsum("bqk,bkd->bqd", attn, v, preferred_element_type=jnp.float32,
                         precision=precision)                           # (bb, tp, hd)
        ctx_heads.append(ctx.reshape(n, hd))

    # Head concat on lanes, then a single full-K output projection (n, D) @ (D, D).
    ctx_full = jnp.concatenate(ctx_heads, axis=-1).astype(cdt)          # (n, D)
    attn_out = jnp.dot(ctx_full, projw_ref[...], preferred_element_type=jnp.float32,
                       precision=precision) + projb_ref[...]
    x1 = x + attn_out

    xn2 = _layernorm(x1, ln2_w_ref[...], ln2_b_ref[...]).astype(cdt)
    hid = jnp.dot(xn2, fc1w_ref[...], preferred_element_type=jnp.float32,
                  precision=precision) + fc1b_ref[...]
    hid = jax.nn.gelu(hid, approximate=False)        # exact erf GELU == nn.GELU()
    y = jnp.dot(hid.astype(cdt), fc2w_ref[...], preferred_element_type=jnp.float32,
                precision=precision) + fc2b_ref[...]
    o_ref[...] = (x1 + y).reshape(bb, tp, d).astype(o_ref.dtype)


def vit_block(x, bp, *, n_heads, n_tokens, block_b, precision):
    B, Tp, D = x.shape
    assert B % block_b == 0 and Tp % 8 == 0 and D % n_heads == 0
    Dh = bp["fc1_w"].shape[1]
    cdt = bp["qkv_w"].dtype
    approx_recip = bool(cdt != jnp.float32)

    def fixed(shape):
        zeros = (0,) * len(shape)
        return pl.BlockSpec(shape, lambda b, _z=zeros: _z)

    kernel = functools.partial(block_kernel, n_heads=n_heads, n_tokens=n_tokens,
                               precision=precision, approx_recip=approx_recip)
    return pl.pallas_call(
        kernel,
        out_shape=jax.ShapeDtypeStruct((B, Tp, D), jnp.float32),
        grid=(B // block_b,),
        in_specs=[
            pl.BlockSpec((block_b, Tp, D), lambda b: (b, 0, 0)),   # x
            fixed((1, D)), fixed((1, D)),                          # ln1 w, b
            fixed((D, 3 * D)), fixed((1, 3 * D)),                  # fused qkv w, b
            fixed((D, D)), fixed((1, D)),                          # proj w, b
            fixed((1, D)), fixed((1, D)),                          # ln2 w, b
            fixed((D, Dh)), fixed((1, Dh)),                        # fc1 w, b
            fixed((Dh, D)), fixed((1, D)),                         # fc2 w, b
        ],
        out_specs=pl.BlockSpec((block_b, Tp, D), lambda b: (b, 0, 0)),
        compiler_params=pltpu.CompilerParams(
            dimension_semantics=("parallel",),
            # Below v7x's 64 MiB/TC physical VMEM; on v5e/v6e this can go toward
            # ~100 MiB with a larger block_b for big models.
            vmem_limit_bytes=56 * 1024 * 1024,
        ),
    )(x,
      bp["ln1_w"], bp["ln1_b"],
      bp["qkv_w"], bp["qkv_b"],
      bp["proj_w"], bp["proj_b"],
      bp["ln2_w"], bp["ln2_b"],
      bp["fc1_w"], bp["fc1_b"],
      bp["fc2_w"], bp["fc2_b"])


# --------------------------------------------------------------------------------------
# Row-tiled Pallas kernels: patch-embedding projection and final LayerNorm + head
# --------------------------------------------------------------------------------------
def linear_kernel(x_ref, w_ref, b_ref, o_ref, *, precision):
    o_ref[...] = (jnp.dot(x_ref[...], w_ref[...], preferred_element_type=jnp.float32,
                          precision=precision) + b_ref[...]).astype(o_ref.dtype)


def pallas_linear(x2d, w, b, *, precision, tile_rows=256):
    N, K = x2d.shape
    M = w.shape[1]
    tn = min(tile_rows, _round_up(N, 8))
    Npad = _round_up(N, tn)
    if Npad != N:
        x2d = jnp.pad(x2d, ((0, Npad - N), (0, 0)))
    out = pl.pallas_call(
        functools.partial(linear_kernel, precision=precision),
        out_shape=jax.ShapeDtypeStruct((Npad, M), jnp.float32),
        grid=(Npad // tn,),
        in_specs=[pl.BlockSpec((tn, K), lambda i: (i, 0)),
                  pl.BlockSpec((K, M), lambda i: (0, 0)),
                  pl.BlockSpec((1, M), lambda i: (0, 0))],
        out_specs=pl.BlockSpec((tn, M), lambda i: (i, 0)),
        compiler_params=pltpu.CompilerParams(dimension_semantics=("parallel",)),
    )(x2d, w, b)
    return out[:N] if Npad != N else out


def ln_head_kernel(x_ref, lnw_ref, lnb_ref, w_ref, b_ref, o_ref, *, precision):
    xn = _layernorm(x_ref[...], lnw_ref[...], lnb_ref[...])
    o_ref[...] = (jnp.dot(xn, w_ref[...], preferred_element_type=jnp.float32,
                          precision=precision) + b_ref[...]).astype(o_ref.dtype)


def pallas_ln_head(x2d, ln_w, ln_b, w, b, *, precision, tile_rows=256):
    N, D = x2d.shape
    M = w.shape[1]
    tn = min(tile_rows, _round_up(N, 8))
    Npad = _round_up(N, tn)
    if Npad != N:
        x2d = jnp.pad(x2d, ((0, Npad - N), (0, 0)))
    out = pl.pallas_call(
        functools.partial(ln_head_kernel, precision=precision),
        out_shape=jax.ShapeDtypeStruct((Npad, M), jnp.float32),
        grid=(Npad // tn,),
        in_specs=[pl.BlockSpec((tn, D), lambda i: (i, 0)),
                  pl.BlockSpec((1, D), lambda i: (0, 0)),
                  pl.BlockSpec((1, D), lambda i: (0, 0)),
                  pl.BlockSpec((D, M), lambda i: (0, 0)),
                  pl.BlockSpec((1, M), lambda i: (0, 0))],
        out_specs=pl.BlockSpec((tn, M), lambda i: (i, 0)),
        compiler_params=pltpu.CompilerParams(dimension_semantics=("parallel",)),
    )(x2d, ln_w, ln_b, w, b)
    return out[:N] if Npad != N else out


# --------------------------------------------------------------------------------------
# Full ViT forward using the kernels above
# --------------------------------------------------------------------------------------
def vit_forward(img, params, *, patch_size, n_heads, block_b):
    cdt = params["blocks"][0]["qkv_w"].dtype
    precision = jax.lax.Precision.HIGHEST if cdt == jnp.float32 else None
    B = img.shape[0]
    D = params["patch_w"].shape[1]
    patches = extract_patches(img, patch_size)                 # (B, Np, C*p*p) [layout]
    _, Np, Cpp = patches.shape
    emb = pallas_linear(patches.reshape(B * Np, Cpp), params["patch_w"],
                        params["patch_b"], precision=precision).reshape(B, Np, D)
    cls = jnp.broadcast_to(params["cls_token"], (B, 1, D))
    x = jnp.concatenate([cls, emb], axis=1) + params["pos_embed"]
    T = Np + 1
    Tp = _round_up(T, 8)                                       # pad tokens to dense tiles
    if Tp != T:
        x = jnp.pad(x, ((0, 0), (0, Tp - T), (0, 0)))
    for bp in params["blocks"]:
        x = vit_block(x, bp, n_heads=n_heads, n_tokens=T, block_b=block_b,
                      precision=precision)
    # final LayerNorm commutes with the cls-token slice (per-token norm)
    return pallas_ln_head(x[:, 0, :], params["ln_w"], params["ln_b"],
                          params["head_w"], params["head_b"], precision=precision)


# --------------------------------------------------------------------------------------
# Parameter construction / preparation
# --------------------------------------------------------------------------------------
def make_raw_params(key, *, img_size, patch_size, in_channels, embed_dim,
                    depth, n_heads, mlp_ratio, n_classes):
    D = embed_dim
    Dh = int(D * mlp_ratio)
    Np = (img_size // patch_size) ** 2
    Cpp = in_channels * patch_size * patch_size
    keys = jax.random.split(key, depth + 5)
    s = 0.02

    def blk(k):
        ks = jax.random.split(k, 10)
        return {
            "ln1_w": 1.0 + s * jax.random.normal(ks[0], (D,), jnp.float32),
            "ln1_b": s * jax.random.normal(ks[1], (D,), jnp.float32),
            "qkv_w": s * jax.random.normal(ks[2], (D, 3 * D), jnp.float32),
            "qkv_b": s * jax.random.normal(ks[3], (3 * D,), jnp.float32),
            "proj_w": s * jax.random.normal(ks[4], (D, D), jnp.float32),
            "proj_b": s * jax.random.normal(ks[5], (D,), jnp.float32),
            "ln2_w": 1.0 + s * jax.random.normal(ks[6], (D,), jnp.float32),
            "ln2_b": s * jax.random.normal(ks[7], (D,), jnp.float32),
            "fc1_w": s * jax.random.normal(ks[8], (D, Dh), jnp.float32),
            "fc1_b": jnp.zeros((Dh,), jnp.float32),
            "fc2_w": s * jax.random.normal(ks[9], (Dh, D), jnp.float32),
            "fc2_b": jnp.zeros((D,), jnp.float32),
        }

    return {
        "patch_w": s * jax.random.normal(keys[0], (Cpp, D), jnp.float32),
        "patch_b": s * jax.random.normal(keys[1], (D,), jnp.float32),
        "cls_token": s * jax.random.normal(keys[2], (1, 1, D), jnp.float32),
        "pos_embed": s * jax.random.normal(keys[3], (1, Np + 1, D), jnp.float32),
        "head_w": s * jax.random.normal(keys[4], (D, n_classes), jnp.float32),
        "head_b": jnp.zeros((n_classes,), jnp.float32),
        "ln_w": jnp.ones((D,), jnp.float32),
        "ln_b": jnp.zeros((D,), jnp.float32),
        "blocks": [blk(k) for k in keys[5:5 + depth]],
    }


def prepare_block_params(p, n_heads, compute_dtype):
    """Host-side re-layout: fused (D, 3D) QKV weight, softmax scale folded into Q."""
    D = p["qkv_w"].shape[0]
    hd = D // n_heads
    scale = float(hd) ** -0.5
    qkv_w = p["qkv_w"].at[:, :D].multiply(scale)                 # fold 1/sqrt(hd) into Q
    qkv_b = p["qkv_b"].at[:D].multiply(scale)
    f32 = jnp.float32
    # TODO(synk): on v7x, fp8 weight storage (per-tensor scales) would halve resident
    # VMEM and double MXU throughput for the MLP; not needed at these demo sizes.
    return {
        "ln1_w": p["ln1_w"].reshape(1, D).astype(f32),
        "ln1_b": p["ln1_b"].reshape(1, D).astype(f32),
        "qkv_w": qkv_w.astype(compute_dtype),                    # (D, 3D)
        "qkv_b": qkv_b.reshape(1, 3 * D).astype(f32),
        "proj_w": p["proj_w"].astype(compute_dtype),             # (D, D)
        "proj_b": p["proj_b"].reshape(1, D).astype(f32),
        "ln2_w": p["ln2_w"].reshape(1, D).astype(f32),
        "ln2_b": p["ln2_b"].reshape(1, D).astype(f32),
        "fc1_w": p["fc1_w"].astype(compute_dtype),
        "fc1_b": p["fc1_b"].reshape(1, -1).astype(f32),
        "fc2_w": p["fc2_w"].astype(compute_dtype),
        "fc2_b": p["fc2_b"].reshape(1, D).astype(f32),
    }


def prepare_params(raw, n_heads, compute_dtype):
    return {
        "patch_w": raw["patch_w"],
        "patch_b": raw["patch_b"].reshape(1, -1),
        "cls_token": raw["cls_token"],
        "pos_embed": raw["pos_embed"],
        "ln_w": raw["ln_w"].reshape(1, -1),
        "ln_b": raw["ln_b"].reshape(1, -1),
        "head_w": raw["head_w"],
        "head_b": raw["head_b"].reshape(1, -1),
        "blocks": [prepare_block_params(bp, n_heads, compute_dtype)
                   for bp in raw["blocks"]],
    }


# --------------------------------------------------------------------------------------
# Pure-JAX reference (mirrors the PyTorch forward; dropout p=0 => identity)
# --------------------------------------------------------------------------------------
def _ln_ref(x, w, b, eps=1e-6):
    mu = jnp.mean(x, -1, keepdims=True)
    var = jnp.mean((x - mu) ** 2, -1, keepdims=True)
    return (x - mu) / jnp.sqrt(var + eps) * w + b


def reference_block(x, p, n_heads):
    B, T, D = x.shape
    hd = D // n_heads
    scale = hd ** -0.5
    xn = _ln_ref(x, p["ln1_w"], p["ln1_b"])
    qkv = xn @ p["qkv_w"] + p["qkv_b"]
    qkv = qkv.reshape(B, T, 3, n_heads, hd).transpose(2, 0, 3, 1, 4)
    q, k, v = qkv[0], qkv[1], qkv[2]
    attn = jax.nn.softmax(jnp.einsum("bhqd,bhkd->bhqk", q, k) * scale, axis=-1)
    ctx = jnp.einsum("bhqk,bhkd->bhqd", attn, v).transpose(0, 2, 1, 3).reshape(B, T, D)
    x = x + (ctx @ p["proj_w"] + p["proj_b"])
    xn2 = _ln_ref(x, p["ln2_w"], p["ln2_b"])
    h = jax.nn.gelu(xn2 @ p["fc1_w"] + p["fc1_b"], approximate=False)
    return x + (h @ p["fc2_w"] + p["fc2_b"])


def vit_reference(img, raw, *, patch_size, n_heads):
    patches = extract_patches(img, patch_size)
    x = patches @ raw["patch_w"] + raw["patch_b"]
    B, Np, D = x.shape
    cls = jnp.broadcast_to(raw["cls_token"], (B, 1, D))
    x = jnp.concatenate([cls, x], axis=1) + raw["pos_embed"]
    for p in raw["blocks"]:
        x = reference_block(x, p, n_heads)
    x = _ln_ref(x, raw["ln_w"], raw["ln_b"])
    return x[:, 0] @ raw["head_w"] + raw["head_b"]


# --------------------------------------------------------------------------------------
if __name__ == "__main__":
    # Small ViT: 32x32 image, 8x8 patches -> 16 patches + cls = 17 tokens (padded to 24).
    # block_b=8 => M = block_b*Tp = 192 rows per matmul; batch grid has 2 iterations
    # so v7x can shard batch blocks across its 2 TensorCores.
    img_size, patch_size, in_channels = 32, 8, 3
    embed_dim, depth, n_heads, mlp_ratio, n_classes = 128, 2, 4, 4.0, 16
    B, block_b = 16, 8

    key = jax.random.PRNGKey(0)
    k_img, k_par = jax.random.split(key)
    img = jax.random.normal(k_img, (B, in_channels, img_size, img_size), jnp.float32)
    raw = make_raw_params(k_par, img_size=img_size, patch_size=patch_size,
                          in_channels=in_channels, embed_dim=embed_dim, depth=depth,
                          n_heads=n_heads, mlp_ratio=mlp_ratio, n_classes=n_classes)

    # High-precision reference, scoped to the correctness check only.
    with jax.default_matmul_precision("highest"):
        ref = vit_reference(img, raw, patch_size=patch_size, n_heads=n_heads)
    ref = jax.block_until_ready(ref)

    # 1) f32 compute path (HIGHEST-precision dots): tight semantic check.
    p32 = prepare_params(raw, n_heads, jnp.float32)
    out32 = jax.block_until_ready(
        vit_forward(img, p32, patch_size=patch_size, n_heads=n_heads, block_b=block_b))
    assert out32.shape == (B, n_classes)
    assert jnp.max(jnp.abs(out32 - ref)) < 2e-3, "f32 path mismatch vs reference"

    # 2) bf16 MXU path (f32 accumulation / residuals): the performance configuration.
    pbf = prepare_params(raw, n_heads, jnp.bfloat16)
    outbf = jax.block_until_ready(
        vit_forward(img, pbf, patch_size=patch_size, n_heads=n_heads, block_b=block_b))
    assert outbf.shape == (B, n_classes)
    assert jnp.max(jnp.abs(outbf - ref)) < 5e-2, "bf16 path mismatch vs reference"

    print("KERNEL_OK")
</pallas_src>

<mosaic_0001>
module attributes {stable_mosaic.version = 11 : i64} {
  func.func @linear_kernel(%arg0: i32, %arg1: memref<256x192xf32, #tpu.memory_space<vmem>>, %arg2: memref<192x128xf32, #tpu.memory_space<vmem>>, %arg3: memref<1x128xf32, #tpu.memory_space<vmem>>, %arg4: memref<256x128xf32, #tpu.memory_space<vmem>>) attributes {dimension_semantics = [#tpu.dimension_semantics<parallel>], iteration_bounds = array<i64: 1>, scalar_prefetch = 0 : i64, scratch_operands = 0 : i64, tpu.core_type = #tpu.core_type<tc>, window_params = [{transform_indices = @transform_0, window_bounds = array<i64: 256, 192>}, {pipeline_mode = #tpu.pipeline_mode<synchronous>, transform_indices = @transform_1, window_bounds = array<i64: 192, 128>}, {pipeline_mode = #tpu.pipeline_mode<synchronous>, transform_indices = @transform_2, window_bounds = array<i64: 1, 128>}, {transform_indices = @transform_3, window_bounds = array<i64: 256, 128>}]} {
    %c0 = arith.constant 0 : index
    %c0_0 = arith.constant 0 : index
    %0 = vector.load %arg1[%c0, %c0_0] : memref<256x192xf32, #tpu.memory_space<vmem>>, vector<256x192xf32>
    %c0_1 = arith.constant 0 : index
    %c0_2 = arith.constant 0 : index
    %1 = vector.load %arg2[%c0_1, %c0_2] : memref<192x128xf32, #tpu.memory_space<vmem>>, vector<192x128xf32>
    %cst = arith.constant dense<0.000000e+00> : vector<256x128xf32>
    %2 = tpu.matmul %0, %1, %cst {dimension_numbers = #tpu.dot_dimension_numbers<[1], [0], [0], [1], [0, 0, 1, 1], [], []>, precision = #tpu.contract_precision<fp32>} : vector<256x192xf32>, vector<192x128xf32>, vector<256x128xf32> -> vector<256x128xf32>
    %c0_3 = arith.constant 0 : index
    %c0_4 = arith.constant 0 : index
    %3 = vector.load %arg3[%c0_3, %c0_4] : memref<1x128xf32, #tpu.memory_space<vmem>>, vector<1x128xf32>
    %4 = vector.broadcast %3 : vector<1x128xf32> to vector<256x128xf32>
    %5 = arith.addf %2, %4 : vector<256x128xf32>
    %c0_5 = arith.constant 0 : index
    %c0_6 = arith.constant 0 : index
    %6 = vector.load %arg4[%c0_5, %c0_6] : memref<256x128xf32, #tpu.memory_space<vmem>>, vector<256x128xf32>
    tpu.vector_store %arg4[%c0_5, %c0_6], %5 {strides = array<i32>} : memref<256x128xf32, #tpu.memory_space<vmem>>, vector<256x128xf32>,
    return
  }
  func.func @transform_0(%arg0: i32) -> (i32, i32) {
    %c0_i32 = arith.constant 0 : i32
    %c0_i32_0 = arith.constant 0 : i32
    return %arg0, %c0_i32 : i32, i32
  }
  func.func @transform_1(%arg0: i32) -> (i32, i32) {
    %c0_i32 = arith.constant 0 : i32
    %c0_i32_0 = arith.constant 0 : i32
    %c0_i32_1 = arith.constant 0 : i32
    return %c0_i32, %c0_i32_0 : i32, i32
  }
  func.func @transform_2(%arg0: i32) -> (i32, i32) {
    %c0_i32 = arith.constant 0 : i32
    %c0_i32_0 = arith.constant 0 : i32
    %c0_i32_1 = arith.constant 0 : i32
    return %c0_i32, %c0_i32_0 : i32, i32
  }
  func.func @transform_3(%arg0: i32) -> (i32, i32) {
    %c0_i32 = arith.constant 0 : i32
    %c0_i32_0 = arith.constant 0 : i32
    return %arg0, %c0_i32 : i32, i32
  }
}

</mosaic_0001>

<llo_original>
// kernel: tpu_custom_call.1
$region0: #{tpu_custom_call.1}
  #allocation0 [shape = 'u32[]', space=smem, size = 0x4, offset = 0x4, fixed_abs, tag = 'smem constant byte address 0x4 - core index']
  #allocation1 [shape = 'u32[144,128]{1,0:T(1,128)}', space=vmem, size = 0x12000, scoped, tag = 'internal scratch']
  %s0 = inlined_call_operand.vmem [shape: f32[256,192], index: 0, kind: input, shape index: {}]
  %s1 = inlined_call_operand.vmem [shape: f32[192,128], index: 1, kind: input, shape index: {}]
  %s2 = inlined_call_operand.vmem [shape: f32[1,128], index: 2, kind: input, shape index: {}]
  %s3 = inlined_call_operand.hbm [shape: f32[256,128], index: 3, kind: output, shape index: {}]
  %s4 = sld [smem:[#allocation0]]
  $region22: #{tpu_custom_call.1} parent=0
    _
  %s6 = ssub.s32 1, %s4
  %s7 = scalar_select 0, %s6, %s4
  $region1: #{tpu_custom_call.1} parent=0
    #allocation2 [shape = 'u8[131072]{0}', space=vmem, size = 0x20000, scoped, tag = 'output window, operand 0, single buffered']
    #allocation3 [shape = 's32[1]{0}', space=sflag, size = 0x4, scoped, tag = 'scoped memory for tpu_custom_call.1']
    %8 = vsyncpa [#allocation3], 0
    // Predicated region
    $region2: #{tpu_custom_call.1} parent=1 // pred_check
      _
    $region3: #{tpu_custom_call.1} parent=1 // pred_check_branch
      %10 = sbr.rel (0) target = $region5
    $region4: #{tpu_custom_call.1} parent=1 // pred_region
      _
    $region5: #{tpu_custom_call.1} parent=1 // pred_fallthru
      _
    // Predicated region
    $region6: #{tpu_custom_call.1} parent=1 // pred_check
      _
    $region7: #{tpu_custom_call.1} parent=1 // pred_check_branch
      %12 = sbr.rel (0) target = $region9
    $region8: #{tpu_custom_call.1} parent=1 // pred_region
      _
    $region9: #{tpu_custom_call.1} parent=1 // pred_fallthru
      _
    // Predicated region
    $region10: #{tpu_custom_call.1} parent=1 // pred_check
      _
    $region11: #{tpu_custom_call.1} parent=1 // pred_check_branch
      %14 = sbr.rel (0) target = $region13
    $region12: #{tpu_custom_call.1} parent=1 // pred_region
      _
    $region13: #{tpu_custom_call.1} parent=1 // pred_fallthru
      _
    %v15 = vld [vmem:[%s0] sm:$0xff]
    %v16 = vld [vmem:[%s0 + $0x8] sm:$0xff]
    %v17 = vld [vmem:[%s0 + $0x10] sm:$0xff]
    %v18 = vld [vmem:[%s0 + $0x18] sm:$0xff]
    %v19 = vld [vmem:[%s0 + $0x20] sm:$0xff]
    %v20 = vld [vmem:[%s0 + $0x28] sm:$0xff]
    %v21 = vld [vmem:[%s0 + $0x30] sm:$0xff]
    %v22 = vld [vmem:[%s0 + $0x38] sm:$0xff]
    %v23 = vld [vmem:[%s0 + $0x40] sm:$0xff]
    %v24 = vld [vmem:[%s0 + $0x48] sm:$0xff]
    %v25 = vld [vmem:[%s0 + $0x50] sm:$0xff]
    %v26 = vld [vmem:[%s0 + $0x58] sm:$0xff]
    %v27 = vld [vmem:[%s0 + $0x60] sm:$0xff]
    %v28 = vld [vmem:[%s0 + $0x68] sm:$0xff]
    %v29 = vld [vmem:[%s0 + $0x70] sm:$0xff]
    %v30 = vld [vmem:[%s0 + $0x78] sm:$0xff]
    %v31 = vld [vmem:[%s0 + $0x80] sm:$0xff]
    %v32 = vld [vmem:[%s0 + $0x88] sm:$0xff]
    %v33 = vld [vmem:[%s0 + $0x90] sm:$0xff]
    %v34 = vld [vmem:[%s0 + $0x98] sm:$0xff]
    %v35 = vld [vmem:[%s0 + $0xa0] sm:$0xff]
    %v36 = vld [vmem:[%s0 + $0xa8] sm:$0xff]
    %v37 = vld [vmem:[%s0 + $0xb0] sm:$0xff]
    %v38 = vld [vmem:[%s0 + $0xb8] sm:$0xff]
    %v39 = vld [vmem:[%s0 + $0xc0] sm:$0xff]
    %v40 = vld [vmem:[%s0 + $0xc8] sm:$0xff]
    %v41 = vld [vmem:[%s0 + $0xd0] sm:$0xff]
    %v42 = vld [vmem:[%s0 + $0xd8] sm:$0xff]
    %v43 = vld [vmem:[%s0 + $0xe0] sm:$0xff]
    %v44 = vld [vmem:[%s0 + $0xe8] sm:$0xff]
    %v45 = vld [vmem:[%s0 + $0xf0] sm:$0xff]
    %v46 = vld [vmem:[%s0 + $0xf8] sm:$0xff]
    %v47 = vld [vmem:[%s0 + $0x100] sm:$0xff]
    %v48 = vld [vmem:[%s0 + $0x108] sm:$0xff]
    %v49 = vld [vmem:[%s0 + $0x110] sm:$0xff]
    %v50 = vld [vmem:[%s0 + $0x118] sm:$0xff]
    %v51 = vld [vmem:[%s0 + $0x120] sm:$0xff]
    %v52 = vld [vmem:[%s0 + $0x128] sm:$0xff]
    %v53 = vld [vmem:[%s0 + $0x130] sm:$0xff]
    %v54 = vld [vmem:[%s0 + $0x138] sm:$0xff]
    %v55 = vld [vmem:[%s0 + $0x140] sm:$0xff]
    %v56 = vld [vmem:[%s0 + $0x148] sm:$0xff]
    %v57 = vld [vmem:[%s0 + $0x150] sm:$0xff]
    %v58 = vld [vmem:[%s0 + $0x158] sm:$0xff]
    %v59 = vld [vmem:[%s0 + $0x160] sm:$0xff]
    %v60 = vld [vmem:[%s0 + $0x168] sm:$0xff]
    %v61 = vld [vmem:[%s0 + $0x170] sm:$0xff]
    %v62 = vld [vmem:[%s0 + $0x178] sm:$0xff]
    %v63 = vld [vmem:[%s0 + $0x180] sm:$0xff]
    %v64 = vld [vmem:[%s0 + $0x188] sm:$0xff]
    %v65 = vld [vmem:[%s0 + $0x190] sm:$0xff]
    %v66 = vld [vmem:[%s0 + $0x198] sm:$0xff]
    %v67 = vld [vmem:[%s0 + $0x1a0] sm:$0xff]
    %v68 = vld [vmem:[%s0 + $0x1a8] sm:$0xff]
    %v69 = vld [vmem:[%s0 + $0x1b0] sm:$0xff]
    %v70 = vld [vmem:[%s0 + $0x1b8] sm:$0xff]
    %v71 = vld [vmem:[%s0 + $0x1c0] sm:$0xff]
    %v72 = vld [vmem:[%s0 + $0x1c8] sm:$0xff]
    %v73 = vld [vmem:[%s0 + $0x1d0] sm:$0xff]
    %v74 = vld [vmem:[%s0 + $0x1d8] sm:$0xff]
    %v75 = vld [vmem:[%s0 + $0x1e0] sm:$0xff]
    %v76 = vld [vmem:[%s0 + $0x1e8] sm:$0xff]
    %v77 = vld [vmem:[%s0 + $0x1f0] sm:$0xff]
    %v78 = vld [vmem:[%s0 + $0x1f8] sm:$0xff]
    %v79 = vld [vmem:[%s1] sm:$0xff]
    %v80 = vld [vmem:[%s1 + $0x8] sm:$0xff]
    %v81 = vld [vmem:[%s1 + $0x10] sm:$0xff]
    %v82 = vld [vmem:[%s1 + $0x18] sm:$0xff]
    %v83 = vld [vmem:[%s1 + $0x20] sm:$0xff]
    %v84 = vld [vmem:[%s1 + $0x28] sm:$0xff]
    %v85 = vld [vmem:[%s1 + $0x30] sm:$0xff]
    %v86 = vld [vmem:[%s1 + $0x38] sm:$0xff]
    %v87 = vld [vmem:[%s1 + $0x40] sm:$0xff]
    %v88 = vld [vmem:[%s1 + $0x48] sm:$0xff]
    %v89 = vld [vmem:[%s1 + $0x50] sm:$0xff]
    %v90 = vld [vmem:[%s1 + $0x58] sm:$0xff]
    %v91 = vld [vmem:[%s1 + $0x60] sm:$0xff]
    %v92 = vld [vmem:[%s1 + $0x68] sm:$0xff]
    %v93 = vld [vmem:[%s1 + $0x70] sm:$0xff]
    %v94 = vld [vmem:[%s1 + $0x78] sm:$0xff]
    %v95 = vld [vmem:[%s1 + $0x80] sm:$0xff]
    %v96 = vld [vmem:[%s1 + $0x88] sm:$0xff]
    %v97 = vld [vmem:[%s1 + $0x90] sm:$0xff]
    %v98 = vld [vmem:[%s1 + $0x98] sm:$0xff]
    %v99 = vld [vmem:[%s1 + $0xa0] sm:$0xff]
    %v100 = vld [vmem:[%s1 + $0xa8] sm:$0xff]
    %v101 = vld [vmem:[%s1 + $0xb0] sm:$0xff]
    %v102 = vld [vmem:[%s1 + $0xb8] sm:$0xff]
    %v103 = vld [vmem:[%s2] sm:$0x1]
    %v105 = vlaneseq
    %v106 = vshrl.u32 %v105, 7
    %v107 = vsub.s32 0, %v106
    %v108 = vrot.slane %v103, %v107
    %vm110 = vcmask 523264
    %v112 = vsel %vm110, %v16, 0
    %v115 = vsel %vm110, %v18, 0
    %v118 = vsel %vm110, %v20, 0
    %v121 = vsel %vm110, %v22, 0
    %v124 = vsel %vm110, %v24, 0
    %v127 = vsel %vm110, %v26, 0
    %v130 = vsel %vm110, %v28, 0
    %v133 = vsel %vm110, %v30, 0
    %v136 = vsel %vm110, %v32, 0
    %v139 = vsel %vm110, %v34, 0
    %v142 = vsel %vm110, %v36, 0
    %v145 = vsel %vm110, %v38, 0
    %v148 = vsel %vm110, %v40, 0
    %v151 = vsel %vm110, %v42, 0
    %v154 = vsel %vm110, %v44, 0
    %v157 = vsel %vm110, %v46, 0
    %v160 = vsel %vm110, %v48, 0
    %v163 = vsel %vm110, %v50, 0
    %v166 = vsel %vm110, %v52, 0
    %v169 = vsel %vm110, %v54, 0
    %v172 = vsel %vm110, %v56, 0
    %v175 = vsel %vm110, %v58, 0
    %v178 = vsel %vm110, %v60, 0
    %v181 = vsel %vm110, %v62, 0
    %v184 = vsel %vm110, %v64, 0
    %v187 = vsel %vm110, %v66, 0
    %v190 = vsel %vm110, %v68, 0
    %v193 = vsel %vm110, %v70, 0
    %v196 = vsel %vm110, %v72, 0
    %v199 = vsel %vm110, %v74, 0
    %v202 = vsel %vm110, %v76, 0
    %v205 = vsel %vm110, %v78, 0
    %207 = vmatprep.subr.mxu0 0.0
    %v208 = vand.u32 %v79, 4294901760
    %209 = vmatpush1.msra.mxu0 %v208
    %210 = vmatprep.subr.mxu0 0.0
    %v211 = vand.u32 %v80, 4294901760
    %212 = vmatpush1.msra.mxu0 %v211
    %213 = vmatprep.subr.mxu0 0.0
    %v214 = vand.u32 %v81, 4294901760
    %215 = vmatpush1.msra.mxu0 %v214
    %216 = vmatprep.subr.mxu0 0.0
    %v217 = vand.u32 %v82, 4294901760
    %218 = vmatpush1.msra.mxu0 %v217
    %219 = vmatprep.subr.mxu0 0.0
    %v220 = vand.u32 %v83, 4294901760
    %221 = vmatpush1.msra.mxu0 %v220
    %222 = vmatprep.subr.mxu0 0.0
    %v223 = vand.u32 %v84, 4294901760
    %224 = vmatpush1.msra.mxu0 %v223
    %225 = vmatprep.subr.mxu0 0.0
    %v226 = vand.u32 %v85, 4294901760
    %227 = vmatpush1.msra.mxu0 %v226
    %228 = vmatprep.subr.mxu0 0.0
    %v229 = vand.u32 %v86, 4294901760
    %230 = vmatpush1.msra.mxu0 %v229
    %231 = vmatprep.subr.mxu0 0.0
    %v232 = vand.u32 %v87, 4294901760
    %233 = vmatpush1.msra.mxu0 %v232
    %234 = vmatprep.subr.mxu0 0.0
    %v235 = vand.u32 %v88, 4294901760
    %236 = vmatpush1.msra.mxu0 %v235
    %237 = vmatprep.subr.mxu0 0.0
    %v238 = vand.u32 %v89, 4294901760
    %239 = vmatpush1.msra.mxu0 %v238
    %240 = vmatprep.subr.mxu0 0.0
    %v241 = vand.u32 %v90, 4294901760
    %242 = vmatpush1.msra.mxu0 %v241
    %243 = vmatprep.subr.mxu0 0.0
    %v244 = vand.u32 %v91, 4294901760
    %245 = vmatpush1.msra.mxu0 %v244
    %246 = vmatprep.subr.mxu0 0.0
    %v247 = vand.u32 %v92, 4294901760
    %248 = vmatpush1.msra.mxu0 %v247
    %249 = vmatprep.subr.mxu0 0.0
    %v250 = vand.u32 %v93, 4294901760
    %251 = vmatpush1.msra.mxu0 %v250
    %252 = vmatprep.subr.mxu0 0.0
    %v253 = vand.u32 %v94, 4294901760
    %254 = vmatpush1.msra.mxu0 %v253
    %255 = vmatprep.subr.mxu0 0.0
    %v256 = vand.u32 %v95, 4294901760
    %257 = vmatpush1.msra.mxu0 %v256
    %258 = vmatprep.subr.mxu0 0.0
    %v259 = vand.u32 %v96, 4294901760
    %260 = vmatpush1.msra.mxu0 %v259
    %261 = vmatprep.subr.mxu0 0.0
    %v262 = vand.u32 %v97, 4294901760
    %263 = vmatpush1.msra.mxu0 %v262
    %264 = vmatprep.subr.mxu0 0.0
    %v265 = vand.u32 %v98, 4294901760
    %266 = vmatpush1.msra.mxu0 %v265
    %267 = vmatprep.subr.mxu0 0.0
    %v268 = vand.u32 %v99, 4294901760
    %269 = vmatpush1.msra.mxu0 %v268
    %270 = vmatprep.subr.mxu0 0.0
    %v271 = vand.u32 %v100, 4294901760
    %272 = vmatpush1.msra.mxu0 %v271
    %273 = vmatprep.subr.mxu0 0.0
    %v274 = vand.u32 %v101, 4294901760
    %275 = vmatpush1.msra.mxu0 %v274
    %276 = vmatprep.subr.mxu0 0.0
    %v277 = vand.u32 %v102, 4294901760
    %278 = vmatpush1.msra.mxu0 %v277
    %279 = vmatprep.subr.mxu0 0.0
    %280 = vmatpush1.msra.mxu0 0.0
    %281 = vmatprep.subr.mxu0 0.0
    %282 = vmatpush1.msra.mxu0 0.0
    %283 = vmatprep.subr.mxu0 0.0
    %284 = vmatpush1.msra.mxu0 0.0
    %285 = vmatprep.subr.mxu0 0.0
    %286 = vmatpush1.msra.mxu0 0.0
    %287 = vmatprep.subr.mxu0 0.0
    %288 = vmatpush1.msra.mxu0 0.0
    %289 = vmatprep.subr.mxu0 0.0
    %290 = vmatpush1.msra.mxu0 0.0
    %291 = vmatprep.subr.mxu0 0.0
    %292 = vmatpush1.msra.mxu0 0.0
    %293 = vmatprep.subr.mxu0 0.0
    %294 = vmatpush1.msra.mxu0 0.0
    %v295 = vand.u32 %v112, 4294901760
    %v296 = vsub.f32 %v112, %v295
    %v297 = vand.u32 %v296, 4294901760
    %v298 = vsub.f32 %v296, %v297
    %v299 = vand.u32 %v298, 4294901760
    %300 = vmatprep.mubr.f32.mxu0 %v299
    %v301 = vand.u32 %v15, 4294901760
    %v302 = vsub.f32 %v15, %v301
    %v303 = vand.u32 %v302, 4294901760
    %v304 = vsub.f32 %v302, %v303
    %v305 = vand.u32 %v304, 4294901760
    %306 = vmatmul.mubr.f32.gmra.mrb[0].mxu0 %v305
    %v307 = vpop.f32.mrb[0].mxu0
    %v308 = vadd.f32 %v108, %v307
    %v309 = vpop.f32.mrb[0].mxu0
    %v310 = vand.u32 %v115, 4294901760
    %v311 = vsub.f32 %v115, %v310
    %v312 = vand.u32 %v311, 4294901760
    %v313 = vsub.f32 %v311, %v312
    %v314 = vand.u32 %v313, 4294901760
    %315 = vmatprep.mubr.f32.mxu0 %v314
    %v316 = vand.u32 %v17, 4294901760
    %v317 = vsub.f32 %v17, %v316
    %v318 = vand.u32 %v317, 4294901760
    %v319 = vsub.f32 %v317, %v318
    %v320 = vand.u32 %v319, 4294901760
    %321 = vmatmul.mubr.f32.gmra.mrb[0].mxu0 %v320
    %v322 = vpop.f32.mrb[0].mxu0
    %v323 = vadd.f32 %v108, %v322
    %v324 = vpop.f32.mrb[0].mxu0
    %v325 = vand.u32 %v118, 4294901760
    %v326 = vsub.f32 %v118, %v325
    %v327 = vand.u32 %v326, 4294901760
    %v328 = vsub.f32 %v326, %v327
    %v329 = vand.u32 %v328, 4294901760
    %330 = vmatprep.mubr.f32.mxu0 %v329
    %v331 = vand.u32 %v19, 4294901760
    %v332 = vsub.f32 %v19, %v331
    %v333 = vand.u32 %v332, 4294901760
    %v334 = vsub.f32 %v332, %v333
    %v335 = vand.u32 %v334, 4294901760
    %336 = vmatmul.mubr.f32.gmra.mrb[0].mxu0 %v335
    %v337 = vpop.f32.mrb[0].mxu0
    %v338 = vadd.f32 %v108, %v337
    %v339 = vpop.f32.mrb[0].mxu0
    %v340 = vand.u32 %v121, 4294901760
    %v341 = vsub.f32 %v121, %v340
    %v342 = vand.u32 %v341, 4294901760
    %v343 = vsub.f32 %v341, %v342
    %v344 = vand.u32 %v343, 4294901760
    %345 = vmatprep.mubr.f32.mxu0 %v344
    %v346 = vand.u32 %v21, 4294901760
    %v347 = vsub.f32 %v21, %v346
    %v348 = vand.u32 %v347, 4294901760
    %v349 = vsub.f32 %v347, %v348
    %v350 = vand.u32 %v349, 4294901760
    %351 = vmatmul.mubr.f32.gmra.mrb[0].mxu0 %v350
    %v352 = vpop.f32.mrb[0].mxu0
    %v353 = vadd.f32 %v108, %v352
    %v354 = vpop.f32.mrb[0].mxu0
    %v355 = vand.u32 %v124, 4294901760
    %v356 = vsub.f32 %v124, %v355
    %v357 = vand.u32 %v356, 4294901760
    %v358 = vsub.f32 %v356, %v357
    %v359 = vand.u32 %v358, 4294901760
    %360 = vmatprep.mubr.f32.mxu0 %v359
    %v361 = vand.u32 %v23, 4294901760
    %v362 = vsub.f32 %v23, %v361
    %v363 = vand.u32 %v362, 4294901760
    %v364 = vsub.f32 %v362, %v363
    %v365 = vand.u32 %v364, 4294901760
    %366 = vmatmul.mubr.f32.gmra.mrb[0].mxu0 %v365
    %v367 = vpop.f32.mrb[0].mxu0
    %v368 = vadd.f32 %v108, %v367
    %v369 = vpop.f32.mrb[0].mxu0
    %v370 = vand.u32 %v127, 4294901760
    %v371 = vsub.f32 %v127, %v370
    %v372 = vand.u32 %v371, 4294901760
    %v373 = vsub.f32 %v371, %v372
    %v374 = vand.u32 %v373, 4294901760
    %375 = vmatprep.mubr.f32.mxu0 %v374
    %v376 = vand.u32 %v25, 4294901760
    %v377 = vsub.f32 %v25, %v376
    %v378 = vand.u32 %v377, 4294901760
    %v379 = vsub.f32 %v377, %v378
    %v380 = vand.u32 %v379, 4294901760
    %381 = vmatmul.mubr.f32.gmra.mrb[0].mxu0 %v380
    %v382 = vpop.f32.mrb[0].mxu0
    %v383 = vadd.f32 %v108, %v382
    %v384 = vpop.f32.mrb[0].mxu0
    %v385 = vand.u32 %v130, 4294901760
    %v386 = vsub.f32 %v130, %v385
    %v387 = vand.u32 %v386, 4294901760
    %v388 = vsub.f32 %v386, %v387
    %v389 = vand.u32 %v388, 4294901760
    %390 = vmatprep.mubr.f32.mxu0 %v389
    %v391 = vand.u32 %v27, 4294901760
    %v392 = vsub.f32 %v27, %v391
    %v393 = vand.u32 %v392, 4294901760
    %v394 = vsub.f32 %v392, %v393
    %v395 = vand.u32 %v394, 4294901760
    %396 = vmatmul.mubr.f32.gmra.mrb[0].mxu0 %v395
    %v397 = vpop.f32.mrb[0].mxu0
    %v398 = vadd.f32 %v108, %v397
    %v399 = vpop.f32.mrb[0].mxu0
    %v400 = vand.u32 %v133, 4294901760
    %v401 = vsub.f32 %v133, %v400
    %v402 = vand.u32 %v401, 4294901760
    %v403 = vsub.f32 %v401, %v402
    %v404 = vand.u32 %v403, 4294901760
    %405 = vmatprep.mubr.f32.mxu0 %v404
    %v406 = vand.u32 %v29, 4294901760
    %v407 = vsub.f32 %v29, %v406
    %v408 = vand.u32 %v407, 4294901760
    %v409 = vsub.f32 %v407, %v408
    %v410 = vand.u32 %v409, 4294901760
    %411 = vmatmul.mubr.f32.gmra.mrb[0].mxu0 %v410
    %v412 = vpop.f32.mrb[0].mxu0
    %v413 = vadd.f32 %v108, %v412
    %v414 = vpop.f32.mrb[0].mxu0
    %v415 = vand.u32 %v136, 4294901760
    %v416 = vsub.f32 %v136, %v415
    %v417 = vand.u32 %v416, 4294901760
    %v418 = vsub.f32 %v416, %v417
    %v419 = vand.u32 %v418, 4294901760
    %420 = vmatprep.mubr.f32.mxu0 %v419
    %v421 = vand.u32 %v31, 4294901760
    %v422 = vsub.f32 %v31, %v421
    %v423 = vand.u32 %v422, 4294901760
    %v424 = vsub.f32 %v422, %v423
    %v425 = vand.u32 %v424, 4294901760
    %426 = vmatmul.mubr.f32.gmra.mrb[0].mxu0 %v425
    %v427 = vpop.f32.mrb[0].mxu0
    %v428 = vadd.f32 %v108, %v427
    %v429 = vpop.f32.mrb[0].mxu0
    %v430 = vand.u32 %v139, 4294901760
    %v431 = vsub.f32 %v139, %v430
    %v432 = vand.u32 %v431, 4294901760
    %v433 = vsub.f32 %v431, %v432
    %v434 = vand.u32 %v433, 4294901760
    %435 = vmatprep.mubr.f32.mxu0 %v434
    %v436 = vand.u32 %v33, 4294901760
    %v437 = vsub.f32 %v33, %v436
    %v438 = vand.u32 %v437, 4294901760
    %v439 = vsub.f32 %v437, %v438
    %v440 = vand.u32 %v439, 4294901760
    %441 = vmatmul.mubr.f32.gmra.mrb[0].mxu0 %v440
    %v442 = vpop.f32.mrb[0].mxu0
    %v443 = vadd.f32 %v108, %v442
    %v444 = vpop.f32.mrb[0].mxu0
    %v445 = vand.u32 %v142, 4294901760
    %v446 = vsub.f32 %v142, %v445
    %v447 = vand.u32 %v446, 4294901760
    %v448 = vsub.f32 %v446, %v447
    %v449 = vand.u32 %v448, 4294901760
    %450 = vmatprep.mubr.f32.mxu0 %v449
    %v451 = vand.u32 %v35, 4294901760
    %v452 = vsub.f32 %v35, %v451
    %v453 = vand.u32 %v452, 4294901760
    %v454 = vsub.f32 %v452, %v453
    %v455 = vand.u32 %v454, 4294901760
    %456 = vmatmul.mubr.f32.gmra.mrb[0].mxu0 %v455
    %v457 = vpop.f32.mrb[0].mxu0
    %v458 = vadd.f32 %v108, %v457
    %v459 = vpop.f32.mrb[0].mxu0
    %v460 = vand.u32 %v145, 4294901760
    %v461 = vsub.f32 %v145, %v460
    %v462 = vand.u32 %v461, 4294901760
    %v463 = vsub.f32 %v461, %v462
    %v464 = vand.u32 %v463, 4294901760
    %465 = vmatprep.mubr.f32.mxu0 %v464
    %v466 = vand.u32 %v37, 4294901760
    %v467 = vsub.f32 %v37, %v466
    %v468 = vand.u32 %v467, 4294901760
    %v469 = vsub.f32 %v467, %v468
    %v470 = vand.u32 %v469, 4294901760
    %471 = vmatmul.mubr.f32.gmra.mrb[0].mxu0 %v470
    %v472 = vpop.f32.mrb[0].mxu0
    %v473 = vadd.f32 %v108, %v472
    %v474 = vpop.f32.mrb[0].mxu0
    %v475 = vand.u32 %v148, 4294901760
    %v476 = vsub.f32 %v148, %v475
    %v477 = vand.u32 %v476, 4294901760
    %v478 = vsub.f32 %v476, %v477
    %v479 = vand.u32 %v478, 4294901760
    %480 = vmatprep.mubr.f32.mxu0 %v479
    %v481 = vand.u32 %v39, 4294901760
    %v482 = vsub.f32 %v39, %v481
    %v483 = vand.u32 %v482, 4294901760
    %v484 = vsub.f32 %v482, %v483
    %v485 = vand.u32 %v484, 4294901760
    %486 = vmatmul.mubr.f32.gmra.mrb[0].mxu0 %v485
    %v487 = vpop.f32.mrb[0].mxu0
    %v488 = vadd.f32 %v108, %v487
    %v489 = vpop.f32.mrb[0].mxu0
    %v490 = vand.u32 %v151, 4294901760
    %v491 = vsub.f32 %v151, %v490
    %v492 = vand.u32 %v491, 4294901760
    %v493 = vsub.f32 %v491, %v492
    %v494 = vand.u32 %v493, 4294901760
    %495 = vmatprep.mubr.f32.mxu0 %v494
    %v496 = vand.u32 %v41, 4294901760
    %v497 = vsub.f32 %v41, %v496
    %v498 = vand.u32 %v497, 4294901760
    %v499 = vsub.f32 %v497, %v498
    %v500 = vand.u32 %v499, 4294901760
    %501 = vmatmul.mubr.f32.gmra.mrb[0].mxu0 %v500
    %v502 = vpop.f32.mrb[0].mxu0
    %v503 = vadd.f32 %v108, %v502
    %v504 = vpop.f32.mrb[0].mxu0
    %v505 = vand.u32 %v154, 4294901760
    %v506 = vsub.f32 %v154, %v505
    %v507 = vand.u32 %v506, 4294901760
    %v508 = vsub.f32 %v506, %v507
    %v509 = vand.u32 %v508, 4294901760
    %510 = vmatprep.mubr.f32.mxu0 %v509
    %v511 = vand.u32 %v43, 4294901760
    %v512 = vsub.f32 %v43, %v511
    %v513 = vand.u32 %v512, 4294901760
    %v514 = vsub.f32 %v512, %v513
    %v515 = vand.u32 %v514, 4294901760
    %516 = vmatmul.mubr.f32.gmra.mrb[0].mxu0 %v515
    %v517 = vpop.f32.mrb[0].mxu0
    %v518 = vadd.f32 %v108, %v517
    %v519 = vpop.f32.mrb[0].mxu0
    %v520 = vand.u32 %v157, 4294901760
    %v521 = vsub.f32 %v157, %v520
    %v522 = vand.u32 %v521, 4294901760
    %v523 = vsub.f32 %v521, %v522
    %v524 = vand.u32 %v523, 4294901760
    %525 = vmatprep.mubr.f32.mxu0 %v524
    %v526 = vand.u32 %v45, 4294901760
    %v527 = vsub.f32 %v45, %v526
    %v528 = vand.u32 %v527, 4294901760
    %v529 = vsub.f32 %v527, %v528
    %v530 = vand.u32 %v529, 4294901760
    %531 = vmatmul.mubr.f32.gmra.mrb[0].mxu0 %v530
    %v532 = vpop.f32.mrb[0].mxu0
    %v533 = vadd.f32 %v108, %v532
    %v534 = vpop.f32.mrb[0].mxu0
    %v535 = vand.u32 %v160, 4294901760
    %v536 = vsub.f32 %v160, %v535
    %v537 = vand.u32 %v536, 4294901760
    %v538 = vsub.f32 %v536, %v537
    %v539 = vand.u32 %v538, 4294901760
    %540 = vmatprep.mubr.f32.mxu0 %v539
    %v541 = vand.u32 %v47, 4294901760
    %v542 = vsub.f32 %v47, %v541
    %v543 = vand.u32 %v542, 4294901760
    %v544 = vsub.f32 %v542, %v543
    %v545 = vand.u32 %v544, 4294901760
    %546 = vmatmul.mubr.f32.gmra.mrb[0].mxu0 %v545
    %v547 = vpop.f32.mrb[0].mxu0
    %v548 = vadd.f32 %v108, %v547
    %v549 = vpop.f32.mrb[0].mxu0
    %v550 = vand.u32 %v163, 4294901760
    %v551 = vsub.f32 %v163, %v550
    %v552 = vand.u32 %v551, 4294901760
    %v553 = vsub.f32 %v551, %v552
    %v554 = vand.u32 %v553, 4294901760
    %555 = vmatprep.mubr.f32.mxu0 %v554
    %v556 = vand.u32 %v49, 4294901760
    %v557 = vsub.f32 %v49, %v556
    %v558 = vand.u32 %v557, 4294901760
    %v559 = vsub.f32 %v557, %v558
    %v560 = vand.u32 %v559, 4294901760
    %561 = vmatmul.mubr.f32.gmra.mrb[0].mxu0 %v560
    %v562 = vpop.f32.mrb[0].mxu0
    %v563 = vadd.f32 %v108, %v562
    %v564 = vpop.f32.mrb[0].mxu0
    %v565 = vand.u32 %v166, 4294901760
    %v566 = vsub.f32 %v166, %v565
    %v567 = vand.u32 %v566, 4294901760
    %v568 = vsub.f32 %v566, %v567
    %v569 = vand.u32 %v568, 4294901760
    %570 = vmatprep.mubr.f32.mxu0 %v569
    %v571 = vand.u32 %v51, 4294901760
    %v572 = vsub.f32 %v51, %v571
    %v573 = vand.u32 %v572, 4294901760
    %v574 = vsub.f32 %v572, %v573
    %v575 = vand.u32 %v574, 4294901760
    %576 = vmatmul.mubr.f32.gmra.mrb[0].mxu0 %v575
    %v577 = vpop.f32.mrb[0].mxu0
    %v578 = vadd.f32 %v108, %v577
    %v579 = vpop.f32.mrb[0].mxu0
    %v580 = vand.u32 %v169, 4294901760
    %v581 = vsub.f32 %v169, %v580
    %v582 = vand.u32 %v581, 4294901760
    %v583 = vsub.f32 %v581, %v582
    %v584 = vand.u32 %v583, 4294901760
    %585 = vmatprep.mubr.f32.mxu0 %v584
    %v586 = vand.u32 %v53, 4294901760
    %v587 = vsub.f32 %v53, %v586
    %v588 = vand.u32 %v587, 4294901760
    %v589 = vsub.f32 %v587, %v588
    %v590 = vand.u32 %v589, 4294901760
    %591 = vmatmul.mubr.f32.gmra.mrb[0].mxu0 %v590
    %v592 = vpop.f32.mrb[0].mxu0
    %v593 = vadd.f32 %v108, %v592
    %v594 = vpop.f32.mrb[0].mxu0
    %v595 = vand.u32 %v172, 4294901760
    %v596 = vsub.f32 %v172, %v595
    %v597 = vand.u32 %v596, 4294901760
    %v598 = vsub.f32 %v596, %v597
    %v599 = vand.u32 %v598, 4294901760
    %600 = vmatprep.mubr.f32.mxu0 %v599
    %v601 = vand.u32 %v55, 4294901760
    %v602 = vsub.f32 %v55, %v601
    %v603 = vand.u32 %v602, 4294901760
    %v604 = vsub.f32 %v602, %v603
    %v605 = vand.u32 %v604, 4294901760
    %606 = vmatmul.mubr.f32.gmra.mrb[0].mxu0 %v605
    %v607 = vpop.f32.mrb[0].mxu0
    %v608 = vadd.f32 %v108, %v607
    %v609 = vpop.f32.mrb[0].mxu0
    %v610 = vand.u32 %v175, 4294901760
    %v611 = vsub.f32 %v175, %v610
    %v612 = vand.u32 %v611, 4294901760
    %v613 = vsub.f32 %v611, %v612
    %v614 = vand.u32 %v613, 4294901760
    %615 = vmatprep.mubr.f32.mxu0 %v614
    %v616 = vand.u32 %v57, 4294901760
    %v617 = vsub.f32 %v57, %v616
    %v618 = vand.u32 %v617, 4294901760
    %v619 = vsub.f32 %v617, %v618
    %v620 = vand.u32 %v619, 4294901760
    %621 = vmatmul.mubr.f32.gmra.mrb[0].mxu0 %v620
    %v622 = vpop.f32.mrb[0].mxu0
    %v623 = vadd.f32 %v108, %v622
    %v624 = vpop.f32.mrb[0].mxu0
    %v625 = vand.u32 %v178, 4294901760
    %v626 = vsub.f32 %v178, %v625
    %v627 = vand.u32 %v626, 4294901760
    %v628 = vsub.f32 %v626, %v627
    %v629 = vand.u32 %v628, 4294901760
    %630 = vmatprep.mubr.f32.mxu0 %v629
    %v631 = vand.u32 %v59, 4294901760
    %v632 = vsub.f32 %v59, %v631
    %v633 = vand.u32 %v632, 4294901760
    %v634 = vsub.f32 %v632, %v633
    %v635 = vand.u32 %v634, 4294901760
    %636 = vmatmul.mubr.f32.gmra.mrb[0].mxu0 %v635
    %v637 = vpop.f32.mrb[0].mxu0
    %v638 = vadd.f32 %v108, %v637
    %v639 = vpop.f32.mrb[0].mxu0
    %v640 = vand.u32 %v181, 4294901760
    %v641 = vsub.f32 %v181, %v640
    %v642 = vand.u32 %v641, 4294901760
    %v643 = vsub.f32 %v641, %v642
    %v644 = vand.u32 %v643, 4294901760
    %645 = vmatprep.mubr.f32.mxu0 %v644
    %v646 = vand.u32 %v61, 4294901760
    %v647 = vsub.f32 %v61, %v646
    %v648 = vand.u32 %v647, 4294901760
    %v649 = vsub.f32 %v647, %v648
    %v650 = vand.u32 %v649, 4294901760
    %651 = vmatmul.mubr.f32.gmra.mrb[0].mxu0 %v650
    %v652 = vpop.f32.mrb[0].mxu0
    %v653 = vadd.f32 %v108, %v652
    %v654 = vpop.f32.mrb[0].mxu0
    %v655 = vand.u32 %v184, 4294901760
    %v656 = vsub.f32 %v184, %v655
    %v657 = vand.u32 %v656, 4294901760
    %v658 = vsub.f32 %v656, %v657
    %v659 = vand.u32 %v658, 4294901760
    %660 = vmatprep.mubr.f32.mxu0 %v659
    %v661 = vand.u32 %v63, 4294901760
    %v662 = vsub.f32 %v63, %v661
    %v663 = vand.u32 %v662, 4294901760
    %v664 = vsub.f32 %v662, %v663
    %v665 = vand.u32 %v664, 4294901760
    %666 = vmatmul.mubr.f32.gmra.mrb[0].mxu0 %v665
    %v667 = vpop.f32.mrb[0].mxu0
    %v668 = vadd.f32 %v108, %v667
    %v669 = vpop.f32.mrb[0].mxu0
    %v670 = vand.u32 %v187, 4294901760
    %v671 = vsub.f32 %v187, %v670
    %v672 = vand.u32 %v671, 4294901760
    %v673 = vsub.f32 %v671, %v672
    %v674 = vand.u32 %v673, 4294901760
    %675 = vmatprep.mubr.f32.mxu0 %v674
    %v676 = vand.u32 %v65, 4294901760
    %v677 = vsub.f32 %v65, %v676
    %v678 = vand.u32 %v677, 4294901760
    %v679 = vsub.f32 %v677, %v678
    %v680 = vand.u32 %v679, 4294901760
    %681 = vmatmul.mubr.f32.gmra.mrb[0].mxu0 %v680
    %v682 = vpop.f32.mrb[0].mxu0
    %v683 = vadd.f32 %v108, %v682
    %v684 = vpop.f32.mrb[0].mxu0
    %v685 = vand.u32 %v190, 4294901760
    %v686 = vsub.f32 %v190, %v685
    %v687 = vand.u32 %v686, 4294901760
    %v688 = vsub.f32 %v686, %v687
    %v689 = vand.u32 %v688, 4294901760
    %690 = vmatprep.mubr.f32.mxu0 %v689
    %v691 = vand.u32 %v67, 4294901760
    %v692 = vsub.f32 %v67, %v691
    %v693 = vand.u32 %v692, 4294901760
    %v694 = vsub.f32 %v692, %v693
    %v695 = vand.u32 %v694, 4294901760
    %696 = vmatmul.mubr.f32.gmra.mrb[0].mxu0 %v695
    %v697 = vpop.f32.mrb[0].mxu0
    %v698 = vadd.f32 %v108, %v697
    %v699 = vpop.f32.mrb[0].mxu0
    %v700 = vand.u32 %v193, 4294901760
    %v701 = vsub.f32 %v193, %v700
    %v702 = vand.u32 %v701, 4294901760
    %v703 = vsub.f32 %v701, %v702
    %v704 = vand.u32 %v703, 4294901760
    %705 = vmatprep.mubr.f32.mxu0 %v704
    %v706 = vand.u32 %v69, 4294901760
    %v707 = vsub.f32 %v69, %v706
    %v708 = vand.u32 %v707, 4294901760
    %v709 = vsub.f32 %v707, %v708
    %v710 = vand.u32 %v709, 4294901760
    %711 = vmatmul.mubr.f32.gmra.mrb[0].mxu0 %v710
    %v712 = vpop.f32.mrb[0].mxu0
    %v713 = vadd.f32 %v108, %v712
    %v714 = vpop.f32.mrb[0].mxu0
    %v715 = vand.u32 %v196, 4294901760
    %v716 = vsub.f32 %v196, %v715
    %v717 = vand.u32 %v716, 4294901760
    %v718 = vsub.f32 %v716, %v717
    %v719 = vand.u32 %v718, 4294901760
    %720 = vmatprep.mubr.f32.mxu0 %v719
    %v721 = vand.u32 %v71, 4294901760
    %v722 = vsub.f32 %v71, %v721
    %v723 = vand.u32 %v722, 4294901760
    %v724 = vsub.f32 %v722, %v723
    %v725 = vand.u32 %v724, 4294901760
    %726 = vmatmul.mubr.f32.gmra.mrb[0].mxu0 %v725
    %v727 = vpop.f32.mrb[0].mxu0
    %v728 = vadd.f32 %v108, %v727
    %v729 = vpop.f32.mrb[0].mxu0
    %v730 = vand.u32 %v199, 4294901760
    %v731 = vsub.f32 %v199, %v730
    %v732 = vand.u32 %v731, 4294901760
    %v733 = vsub.f32 %v731, %v732
    %v734 = vand.u32 %v733, 4294901760
    %735 = vmatprep.mubr.f32.mxu0 %v734
    %v736 = vand.u32 %v73, 4294901760
    %v737 = vsub.f32 %v73, %v736
    %v738 = vand.u32 %v737, 4294901760
    %v739 = vsub.f32 %v737, %v738
    %v740 = vand.u32 %v739, 4294901760
    %741 = vmatmul.mubr.f32.gmra.mrb[0].mxu0 %v740
    %v742 = vpop.f32.mrb[0].mxu0
    %v743 = vadd.f32 %v108, %v742
    %v744 = vpop.f32.mrb[0].mxu0
    %v745 = vand.u32 %v202, 4294901760
    %v746 = vsub.f32 %v202, %v745
    %v747 = vand.u32 %v746, 4294901760
    %v748 = vsub.f32 %v746, %v747
    %v749 = vand.u32 %v748, 4294901760
    %750 = vmatprep.mubr.f32.mxu0 %v749
    %v751 = vand.u32 %v75, 4294901760
    %v752 = vsub.f32 %v75, %v751
    %v753 = vand.u32 %v752, 4294901760
    %v754 = vsub.f32 %v752, %v753
    %v755 = vand.u32 %v754, 4294901760
    %756 = vmatmul.mubr.f32.gmra.mrb[0].mxu0 %v755
    %v757 = vpop.f32.mrb[0].mxu0
    %v758 = vadd.f32 %v108, %v757
    %v759 = vpop.f32.mrb[0].mxu0
    %v760 = vand.u32 %v205, 4294901760
    %v761 = vsub.f32 %v205, %v760
    %v762 = vand.u32 %v761, 4294901760
    %v763 = vsub.f32 %v761, %v762
    %v764 = vand.u32 %v763, 4294901760
    %765 = vmatprep.mubr.f32.mxu0 %v764
    %v766 = vand.u32 %v77, 4294901760
    %v767 = vsub.f32 %v77, %v766
    %v768 = vand.u32 %v767, 4294901760
    %v769 = vsub.f32 %v767, %v768
    %v770 = vand.u32 %v769, 4294901760
    %771 = vmatmul.mubr.f32.gmra.mrb[0].mxu0 %v770
    %v772 = vpop.f32.mrb[0].mxu0
    %v773 = vadd.f32 %v108, %v772
    %v774 = vpop.f32.mrb[0].mxu0
    %775 = vdwg.mxu0
    %776 = vmatprep.subr.mxu0 0.0
    %v777 = vand.u32 %v79, 4294901760
    %v778 = vsub.f32 %v79, %v777
    %v779 = vand.u32 %v778, 4294901760
    %v780 = vsub.f32 %v778, %v779
    %v781 = vand.u32 %v780, 4294901760
    %782 = vmatpush1.msra.mxu0 %v781
    %783 = vmatprep.subr.mxu0 0.0
    %v784 = vand.u32 %v80, 4294901760
    %v785 = vsub.f32 %v80, %v784
    %v786 = vand.u32 %v785, 4294901760
    %v787 = vsub.f32 %v785, %v786
    %v788 = vand.u32 %v787, 4294901760
    %789 = vmatpush1.msra.mxu0 %v788
    %790 = vmatprep.subr.mxu0 0.0
    %v791 = vand.u32 %v81, 4294901760
    %v792 = vsub.f32 %v81, %v791
    %v793 = vand.u32 %v792, 4294901760
    %v794 = vsub.f32 %v792, %v793
    %v795 = vand.u32 %v794, 4294901760
    %796 = vmatpush1.msra.mxu0 %v795
    %797 = vmatprep.subr.mxu0 0.0
    %v798 = vand.u32 %v82, 4294901760
    %v799 = vsub.f32 %v82, %v798
    %v800 = vand.u32 %v799, 4294901760
    %v801 = vsub.f32 %v799, %v800
    %v802 = vand.u32 %v801, 4294901760
    %803 = vmatpush1.msra.mxu0 %v802
    %804 = vmatprep.subr.mxu0 0.0
    %v805 = vand.u32 %v83, 4294901760
    %v806 = vsub.f32 %v83, %v805
    %v807 = vand.u32 %v806, 4294901760
    %v808 = vsub.f32 %v806, %v807
    %v809 = vand.u32 %v808, 4294901760
    %810 = vmatpush1.msra.mxu0 %v809
    %811 = vmatprep.subr.mxu0 0.0
    %v812 = vand.u32 %v84, 4294901760
    %v813 = vsub.f32 %v84, %v812
    %v814 = vand.u32 %v813, 4294901760
    %v815 = vsub.f32 %v813, %v814
    %v816 = vand.u32 %v815, 4294901760
    %817 = vmatpush1.msra.mxu0 %v816
    %818 = vmatprep.subr.mxu0 0.0
    %v819 = vand.u32 %v85, 4294901760
    %v820 = vsub.f32 %v85, %v819
    %v821 = vand.u32 %v820, 4294901760
    %v822 = vsub.f32 %v820, %v821
    %v823 = vand.u32 %v822, 4294901760
    %824 = vmatpush1.msra.mxu0 %v823
    %825 = vmatprep.subr.mxu0 0.0
    %v826 = vand.u32 %v86, 4294901760
    %v827 = vsub.f32 %v86, %v826
    %v828 = vand.u32 %v827, 4294901760
    %v829 = vsub.f32 %v827, %v828
    %v830 = vand.u32 %v829, 4294901760
    %831 = vmatpush1.msra.mxu0 %v830
    %832 = vmatprep.subr.mxu0 0.0
    %v833 = vand.u32 %v87, 4294901760
    %v834 = vsub.f32 %v87, %v833
    %v835 = vand.u32 %v834, 4294901760
    %v836 = vsub.f32 %v834, %v835
    %v837 = vand.u32 %v836, 4294901760
    %838 = vmatpush1.msra.mxu0 %v837
    %839 = vmatprep.subr.mxu0 0.0
    %v840 = vand.u32 %v88, 4294901760
    %v841 = vsub.f32 %v88, %v840
    %v842 = vand.u32 %v841, 4294901760
    %v843 = vsub.f32 %v841, %v842
    %v844 = vand.u32 %v843, 4294901760
    %845 = vmatpush1.msra.mxu0 %v844
    %846 = vmatprep.subr.mxu0 0.0
    %v847 = vand.u32 %v89, 4294901760
    %v848 = vsub.f32 %v89, %v847
    %v849 = vand.u32 %v848, 4294901760
    %v850 = vsub.f32 %v848, %v849
    %v851 = vand.u32 %v850, 4294901760
    %852 = vmatpush1.msra.mxu0 %v851
    %853 = vmatprep.subr.mxu0 0.0
    %v854 = vand.u32 %v90, 4294901760
    %v855 = vsub.f32 %v90, %v854
    %v856 = vand.u32 %v855, 4294901760
    %v857 = vsub.f32 %v855, %v856
    %v858 = vand.u32 %v857, 4294901760
    %859 = vmatpush1.msra.mxu0 %v858
    %860 = vmatprep.subr.mxu0 0.0
    %v861 = vand.u32 %v91, 4294901760
    %v862 = vsub.f32 %v91, %v861
    %v863 = vand.u32 %v862, 4294901760
    %v864 = vsub.f32 %v862, %v863
    %v865 = vand.u32 %v864, 4294901760
    %866 = vmatpush1.msra.mxu0 %v865
    %867 = vmatprep.subr.mxu0 0.0
    %v868 = vand.u32 %v92, 4294901760
    %v869 = vsub.f32 %v92, %v868
    %v870 = vand.u32 %v869, 4294901760
    %v871 = vsub.f32 %v869, %v870
    %v872 = vand.u32 %v871, 4294901760
    %873 = vmatpush1.msra.mxu0 %v872
    %874 = vmatprep.subr.mxu0 0.0
    %v875 = vand.u32 %v93, 4294901760
    %v876 = vsub.f32 %v93, %v875
    %v877 = vand.u32 %v876, 4294901760
    %v878 = vsub.f32 %v876, %v877
    %v879 = vand.u32 %v878, 4294901760
    %880 = vmatpush1.msra.mxu0 %v879
    %881 = vmatprep.subr.mxu0 0.0
    %v882 = vand.u32 %v94, 4294901760
    %v883 = vsub.f32 %v94, %v882
    %v884 = vand.u32 %v883, 4294901760
    %v885 = vsub.f32 %v883, %v884
    %v886 = vand.u32 %v885, 4294901760
    %887 = vmatpush1.msra.mxu0 %v886
    %888 = vmatprep.subr.mxu0 0.0
    %v889 = vand.u32 %v95, 4294901760
    %v890 = vsub.f32 %v95, %v889
    %v891 = vand.u32 %v890, 4294901760
    %v892 = vsub.f32 %v890, %v891
    %v893 = vand.u32 %v892, 4294901760
    %894 = vmatpush1.msra.mxu0 %v893
    %895 = vmatprep.subr.mxu0 0.0
    %v896 = vand.u32 %v96, 4294901760
    %v897 = vsub.f32 %v96, %v896
    %v898 = vand.u32 %v897, 4294901760
    %v899 = vsub.f32 %v897, %v898
    %v900 = vand.u32 %v899, 4294901760
    %901 = vmatpush1.msra.mxu0 %v900
    %902 = vmatprep.subr.mxu0 0.0
    %v903 = vand.u32 %v97, 4294901760
    %v904 = vsub.f32 %v97, %v903
    %v905 = vand.u32 %v904, 4294901760
    %v906 = vsub.f32 %v904, %v905
    %v907 = vand.u32 %v906, 4294901760
    %908 = vmatpush1.msra.mxu0 %v907
    %909 = vmatprep.subr.mxu0 0.0
    %v910 = vand.u32 %v98, 4294901760
    %v911 = vsub.f32 %v98, %v910
    %v912 = vand.u32 %v911, 4294901760
    %v913 = vsub.f32 %v911, %v912
    %v914 = vand.u32 %v913, 4294901760
    %915 = vmatpush1.msra.mxu0 %v914
    %916 = vmatprep.subr.mxu0 0.0
    %v917 = vand.u32 %v99, 4294901760
    %v918 = vsub.f32 %v99, %v917
    %v919 = vand.u32 %v918, 4294901760
    %v920 = vsub.f32 %v918, %v919
    %v921 = vand.u32 %v920, 4294901760
    %922 = vmatpush1.msra.mxu0 %v921
    %923 = vmatprep.subr.mxu0 0.0
    %v924 = vand.u32 %v100, 4294901760
    %v925 = vsub.f32 %v100, %v924
    %v926 = vand.u32 %v925, 4294901760
    %v927 = vsub.f32 %v925, %v926
    %v928 = vand.u32 %v927, 4294901760
    %929 = vmatpush1.msra.mxu0 %v928
    %930 = vmatprep.subr.mxu0 0.0
    %v931 = vand.u32 %v101, 4294901760
    %v932 = vsub.f32 %v101, %v931
    %v933 = vand.u32 %v932, 4294901760
    %v934 = vsub.f32 %v932, %v933
    %v935 = vand.u32 %v934, 4294901760
    %936 = vmatpush1.msra.mxu0 %v935
    %937 = vmatprep.subr.mxu0 0.0
    %v938 = vand.u32 %v102, 4294901760
    %v939 = vsub.f32 %v102, %v938
    %v940 = vand.u32 %v939, 4294901760
    %v941 = vsub.f32 %v939, %v940
    %v942 = vand.u32 %v941, 4294901760
    %943 = vmatpush1.msra.mxu0 %v942
    %944 = vmatprep.subr.mxu0 0.0
    %945 = vmatpush1.msra.mxu0 0.0
    %946 = vmatprep.subr.mxu0 0.0
    %947 = vmatpush1.msra.mxu0 0.0
    %948 = vmatprep.subr.mxu0 0.0
    %949 = vmatpush1.msra.mxu0 0.0
    %950 = vmatprep.subr.mxu0 0.0
    %951 = vmatpush1.msra.mxu0 0.0
    %952 = vmatprep.subr.mxu0 0.0
    %953 = vmatpush1.msra.mxu0 0.0
    %954 = vmatprep.subr.mxu0 0.0
    %955 = vmatpush1.msra.mxu0 0.0
    %956 = vmatprep.subr.mxu0 0.0
    %957 = vmatpush1.msra.mxu0 0.0
    %958 = vmatprep.subr.mxu0 0.0
    %959 = vmatpush1.msra.mxu0 0.0
    %v960 = vand.u32 %v112, 4294901760
    %961 = vmatprep.mubr.f32.mxu0 %v960
    %v962 = vand.u32 %v15, 4294901760
    %963 = vmatmul.mubr.f32.gmra.mrb[0].mxu0 %v962
    %v964 = vpop.f32.mrb[0].mxu0
    %v965 = vadd.f32 %v308, %v964
    %v966 = vpop.f32.mrb[0].mxu0
    %v967 = vand.u32 %v115, 4294901760
    %968 = vmatprep.mubr.f32.mxu0 %v967
    %v969 = vand.u32 %v17, 4294901760
    %970 = vmatmul.mubr.f32.gmra.mrb[0].mxu0 %v969
    %v971 = vpop.f32.mrb[0].mxu0
    %v972 = vadd.f32 %v323, %v971
    %v973 = vpop.f32.mrb[0].mxu0
    %v974 = vand.u32 %v118, 4294901760
    %975 = vmatprep.mubr.f32.mxu0 %v974
    %v976 = vand.u32 %v19, 4294901760
    %977 = vmatmul.mubr.f32.gmra.mrb[0].mxu0 %v976
    %v978 = vpop.f32.mrb[0].mxu0
    %v979 = vadd.f32 %v338, %v978
    %v980 = vpop.f32.mrb[0].mxu0
    %v981 = vand.u32 %v121, 4294901760
    %982 = vmatprep.mubr.f32.mxu0 %v981
    %v983 = vand.u32 %v21, 4294901760
    %984 = vmatmul.mubr.f32.gmra.mrb[0].mxu0 %v983
    %v985 = vpop.f32.mrb[0].mxu0
    %v986 = vadd.f32 %v353, %v985
    %v987 = vpop.f32.mrb[0].mxu0
    %v988 = vand.u32 %v124, 4294901760
    %989 = vmatprep.mubr.f32.mxu0 %v988
    %v990 = vand.u32 %v23, 4294901760
    %991 = vmatmul.mubr.f32.gmra.mrb[0].mxu0 %v990
    %v992 = vpop.f32.mrb[0].mxu0
    %v993 = vadd.f32 %v368, %v992
    %v994 = vpop.f32.mrb[0].mxu0
    %v995 = vand.u32 %v127, 4294901760
    %996 = vmatprep.mubr.f32.mxu0 %v995
    %v997 = vand.u32 %v25, 4294901760
    %998 = vmatmul.mubr.f32.gmra.mrb[0].mxu0 %v997
    %v999 = vpop.f32.mrb[0].mxu0
    %v1000 = vadd.f32 %v383, %v999
    %v1001 = vpop.f32.mrb[0].mxu0
    %v1002 = vand.u32 %v130, 4294901760
    %1003 = vmatprep.mubr.f32.mxu0 %v1002
    %v1004 = vand.u32 %v27, 4294901760
    %1005 = vmatmul.mubr.f32.gmra.mrb[0].mxu0 %v1004
    %v1006 = vpop.f32.mrb[0].mxu0
    %v1007 = vadd.f32 %v398, %v1006
    %v1008 = vpop.f32.mrb[0].mxu0
    %v1009 = vand.u32 %v133, 4294901760
    %1010 = vmatprep.mubr.f32.mxu0 %v1009
    %v1011 = vand.u32 %v29, 4294901760
    %1012 = vmatmul.mubr.f32.gmra.mrb[0].mxu0 %v1011
    %v1013 = vpop.f32.mrb[0].mxu0
    %v1014 = vadd.f32 %v413, %v1013
    %v1015 = vpop.f32.mrb[0].mxu0
    %v1016 = vand.u32 %v136, 4294901760
    %1017 = vmatprep.mubr.f32.mxu0 %v1016
    %v1018 = vand.u32 %v31, 4294901760
    %1019 = vmatmul.mubr.f32.gmra.mrb[0].mxu0 %v1018
    %v1020 = vpop.f32.mrb[0].mxu0
    %v1021 = vadd.f32 %v428, %v1020
    %v1022 = vpop.f32.mrb[0].mxu0
    %v1023 = vand.u32 %v139, 4294901760
    %1024 = vmatprep.mubr.f32.mxu0 %v1023
    %v1025 = vand.u32 %v33, 4294901760
    %1026 = vmatmul.mubr.f32.gmra.mrb[0].mxu0 %v1025
    %v1027 = vpop.f32.mrb[0].mxu0
    %v1028 = vadd.f32 %v443, %v1027
    %v1029 = vpop.f32.mrb[0].mxu0
    %v1030 = vand.u32 %v142, 4294901760
    %1031 = vmatprep.mubr.f32.mxu0 %v1030
    %v1032 = vand.u32 %v35, 4294901760
    %1033 = vmatmul.mubr.f32.gmra.mrb[0].mxu0 %v1032
    %v1034 = vpop.f32.mrb[0].mxu0
    %v1035 = vadd.f32 %v458, %v1034
    %v1036 = vpop.f32.mrb[0].mxu0
    %v1037 = vand.u32 %v145, 4294901760
    %1038 = vmatprep.mubr.f32.mxu0 %v1037
    %v1039 = vand.u32 %v37, 4294901760
    %1040 = vmatmul.mubr.f32.gmra.mrb[0].mxu0 %v1039
    %v1041 = vpop.f32.mrb[0].mxu0
    %v1042 = vadd.f32 %v473, %v1041
    %v1043 = vpop.f32.mrb[0].mxu0
    %v1044 = vand.u32 %v148, 4294901760
    %1045 = vmatprep.mubr.f32.mxu0 %v1044
    %v1046 = vand.u32 %v39, 4294901760
    %1047 = vmatmul.mubr.f32.gmra.mrb[0].mxu0 %v1046
    %v1048 = vpop.f32.mrb[0].mxu0
    %v1049 = vadd.f32 %v488, %v1048
    %v1050 = vpop.f32.mrb[0].mxu0
    %v1051 = vand.u32 %v151, 4294901760
    %1052 = vmatprep.mubr.f32.mxu0 %v1051
    %v1053 = vand.u32 %v41, 4294901760
    %1054 = vmatmul.mubr.f32.gmra.mrb[0].mxu0 %v1053
    %v1055 = vpop.f32.mrb[0].mxu0
    %v1056 = vadd.f32 %v503, %v1055
    %v1057 = vpop.f32.mrb[0].mxu0
    %v1058 = vand.u32 %v154, 4294901760
    %1059 = vmatprep.mubr.f32.mxu0 %v1058
    %v1060 = vand.u32 %v43, 4294901760
    %1061 = vmatmul.mubr.f32.gmra.mrb[0].mxu0 %v1060
    %v1062 = vpop.f32.mrb[0].mxu0
    %v1063 = vadd.f32 %v518, %v1062
    %v1064 = vpop.f32.mrb[0].mxu0
    %v1065 = vand.u32 %v157, 4294901760
    %1066 = vmatprep.mubr.f32.mxu0 %v1065
    %v1067 = vand.u32 %v45, 4294901760
    %1068 = vmatmul.mubr.f32.gmra.mrb[0].mxu0 %v1067
    %v1069 = vpop.f32.mrb[0].mxu0
    %v1070 = vadd.f32 %v533, %v1069
    %v1071 = vpop.f32.mrb[0].mxu0
    %v1072 = vand.u32 %v160, 4294901760
    %1073 = vmatprep.mubr.f32.mxu0 %v1072
    %v1074 = vand.u32 %v47, 4294901760
    %1075 = vmatmul.mubr.f32.gmra.mrb[0].mxu0 %v1074
    %v1076 = vpop.f32.mrb[0].mxu0
    %v1077 = vadd.f32 %v548, %v1076
    %v1078 = vpop.f32.mrb[0].mxu0
    %v1079 = vand.u32 %v163, 4294901760
    %1080 = vmatprep.mubr.f32.mxu0 %v1079
    %v1081 = vand.u32 %v49, 4294901760
    %1082 = vmatmul.mubr.f32.gmra.mrb[0].mxu0 %v1081
    %v1083 = vpop.f32.mrb[0].mxu0
    %v1084 = vadd.f32 %v563, %v1083
    %v1085 = vpop.f32.mrb[0].mxu0
    %v1086 = vand.u32 %v166, 4294901760
    %1087 = vmatprep.mubr.f32.mxu0 %v1086
    %v1088 = vand.u32 %v51, 4294901760
    %1089 = vmatmul.mubr.f32.gmra.mrb[0].mxu0 %v1088
    %v1090 = vpop.f32.mrb[0].mxu0
    %v1091 = vadd.f32 %v578, %v1090
    %v1092 = vpop.f32.mrb[0].mxu0
    %v1093 = vand.u32 %v169, 4294901760
    %1094 = vmatprep.mubr.f32.mxu0 %v1093
    %v1095 = vand.u32 %v53, 4294901760
    %1096 = vmatmul.mubr.f32.gmra.mrb[0].mxu0 %v1095
    %v1097 = vpop.f32.mrb[0].mxu0
    %v1098 = vadd.f32 %v593, %v1097
    %v1099 = vpop.f32.mrb[0].mxu0
    %v1100 = vand.u32 %v172, 4294901760
    %1101 = vmatprep.mubr.f32.mxu0 %v1100
    %v1102 = vand.u32 %v55, 4294901760
    %1103 = vmatmul.mubr.f32.gmra.mrb[0].mxu0 %v1102
    %v1104 = vpop.f32.mrb[0].mxu0
    %v1105 = vadd.f32 %v608, %v1104
    %v1106 = vpop.f32.mrb[0].mxu0
    %v1107 = vand.u32 %v175, 4294901760
    %1108 = vmatprep.mubr.f32.mxu0 %v1107
    %v1109 = vand.u32 %v57, 4294901760
    %1110 = vmatmul.mubr.f32.gmra.mrb[0].mxu0 %v1109
    %v1111 = vpop.f32.mrb[0].mxu0
    %v1112 = vadd.f32 %v623, %v1111
    %v1113 = vpop.f32.mrb[0].mxu0
    %v1114 = vand.u32 %v178, 4294901760
    %1115 = vmatprep.mubr.f32.mxu0 %v1114
    %v1116 = vand.u32 %v59, 4294901760
    %1117 = vmatmul.mubr.f32.gmra.mrb[0].mxu0 %v1116
    %v1118 = vpop.f32.mrb[0].mxu0
    %v1119 = vadd.f32 %v638, %v1118
    %v1120 = vpop.f32.mrb[0].mxu0
    %v1121 = vand.u32 %v181, 4294901760
    %1122 = vmatprep.mubr.f32.mxu0 %v1121
    %v1123 = vand.u32 %v61, 4294901760
    %1124 = vmatmul.mubr.f32.gmra.mrb[0].mxu0 %v1123
    %v1125 = vpop.f32.mrb[0].mxu0
    %v1126 = vadd.f32 %v653, %v1125
    %v1127 = vpop.f32.mrb[0].mxu0
    %v1128 = vand.u32 %v184, 4294901760
    %1129 = vmatprep.mubr.f32.mxu0 %v1128
    %v1130 = vand.u32 %v63, 4294901760
    %1131 = vmatmul.mubr.f32.gmra.mrb[0].mxu0 %v1130
    %v1132 = vpop.f32.mrb[0].mxu0
    %v1133 = vadd.f32 %v668, %v1132
    %v1134 = vpop.f32.mrb[0].mxu0
    %v1135 = vand.u32 %v187, 4294901760
    %1136 = vmatprep.mubr.f32.mxu0 %v1135
    %v1137 = vand.u32 %v65, 4294901760
    %1138 = vmatmul.mubr.f32.gmra.mrb[0].mxu0 %v1137
    %v1139 = vpop.f32.mrb[0].mxu0
    %v1140 = vadd.f32 %v683, %v1139
    %v1141 = vpop.f32.mrb[0].mxu0
    %v1142 = vand.u32 %v190, 4294901760
    %1143 = vmatprep.mubr.f32.mxu0 %v1142
    %v1144 = vand.u32 %v67, 4294901760
    %1145 = vmatmul.mubr.f32.gmra.mrb[0].mxu0 %v1144
    %v1146 = vpop.f32.mrb[0].mxu0
    %v1147 = vadd.f32 %v698, %v1146
    %v1148 = vpop.f32.mrb[0].mxu0
    %v1149 = vand.u32 %v193, 4294901760
    %1150 = vmatprep.mubr.f32.mxu0 %v1149
    %v1151 = vand.u32 %v69, 4294901760
    %1152 = vmatmul.mubr.f32.gmra.mrb[0].mxu0 %v1151
    %v1153 = vpop.f32.mrb[0].mxu0
    %v1154 = vadd.f32 %v713, %v1153
    %v1155 = vpop.f32.mrb[0].mxu0
    %v1156 = vand.u32 %v196, 4294901760
    %1157 = vmatprep.mubr.f32.mxu0 %v1156
    %v1158 = vand.u32 %v71, 4294901760
    %1159 = vmatmul.mubr.f32.gmra.mrb[0].mxu0 %v1158
    %v1160 = vpop.f32.mrb[0].mxu0
    %v1161 = vadd.f32 %v728, %v1160
    %v1162 = vpop.f32.mrb[0].mxu0
    %v1163 = vand.u32 %v199, 4294901760
    %1164 = vmatprep.mubr.f32.mxu0 %v1163
    %v1165 = vand.u32 %v73, 4294901760
    %1166 = vmatmul.mubr.f32.gmra.mrb[0].mxu0 %v1165
    %v1167 = vpop.f32.mrb[0].mxu0
    %v1168 = vadd.f32 %v743, %v1167
    %v1169 = vpop.f32.mrb[0].mxu0
    %v1170 = vand.u32 %v202, 4294901760
    %1171 = vmatprep.mubr.f32.mxu0 %v1170
    %v1172 = vand.u32 %v75, 4294901760
    %1173 = vmatmul.mubr.f32.gmra.mrb[0].mxu0 %v1172
    %v1174 = vpop.f32.mrb[0].mxu0
    %v1175 = vadd.f32 %v758, %v1174
    %v1176 = vpop.f32.mrb[0].mxu0
    %v1177 = vand.u32 %v205, 4294901760
    %1178 = vmatprep.mubr.f32.mxu0 %v1177
    %v1179 = vand.u32 %v77, 4294901760
    %1180 = vmatmul.mubr.f32.gmra.mrb[0].mxu0 %v1179
    %v1181 = vpop.f32.mrb[0].mxu0
    %v1182 = vadd.f32 %v773, %v1181
    %v1183 = vpop.f32.mrb[0].mxu0
    %1184 = vdwg.mxu0
    %1185 = vmatprep.subr.mxu0 0.0
    %v1186 = vand.u32 %v79, 4294901760
    %v1187 = vsub.f32 %v79, %v1186
    %1188 = vmatpush1.msra.mxu0 %v1187
    %1189 = vmatprep.subr.mxu0 0.0
    %v1190 = vand.u32 %v80, 4294901760
    %v1191 = vsub.f32 %v80, %v1190
    %1192 = vmatpush1.msra.mxu0 %v1191
    %1193 = vmatprep.subr.mxu0 0.0
    %v1194 = vand.u32 %v81, 4294901760
    %v1195 = vsub.f32 %v81, %v1194
    %1196 = vmatpush1.msra.mxu0 %v1195
    %1197 = vmatprep.subr.mxu0 0.0
    %v1198 = vand.u32 %v82, 4294901760
    %v1199 = vsub.f32 %v82, %v1198
    %1200 = vmatpush1.msra.mxu0 %v1199
    %1201 = vmatprep.subr.mxu0 0.0
    %v1202 = vand.u32 %v83, 4294901760
    %v1203 = vsub.f32 %v83, %v1202
    %1204 = vmatpush1.msra.mxu0 %v1203
    %1205 = vmatprep.subr.mxu0 0.0
    %v1206 = vand.u32 %v84, 4294901760
    %v1207 = vsub.f32 %v84, %v1206
    %1208 = vmatpush1.msra.mxu0 %v1207
    %1209 = vmatprep.subr.mxu0 0.0
    %v1210 = vand.u32 %v85, 4294901760
    %v1211 = vsub.f32 %v85, %v1210
    %1212 = vmatpush1.msra.mxu0 %v1211
    %1213 = vmatprep.subr.mxu0 0.0
    %v1214 = vand.u32 %v86, 4294901760
    %v1215 = vsub.f32 %v86, %v1214
    %1216 = vmatpush1.msra.mxu0 %v1215
    %1217 = vmatprep.subr.mxu0 0.0
    %v1218 = vand.u32 %v87, 4294901760
    %v1219 = vsub.f32 %v87, %v1218
    %1220 = vmatpush1.msra.mxu0 %v1219
    %1221 = vmatprep.subr.mxu0 0.0
    %v1222 = vand.u32 %v88, 4294901760
    %v1223 = vsub.f32 %v88, %v1222
    %1224 = vmatpush1.msra.mxu0 %v1223
    %1225 = vmatprep.subr.mxu0 0.0
    %v1226 = vand.u32 %v89, 4294901760
    %v1227 = vsub.f32 %v89, %v1226
    %1228 = vmatpush1.msra.mxu0 %v1227
    %1229 = vmatprep.subr.mxu0 0.0
    %v1230 = vand.u32 %v90, 4294901760
    %v1231 = vsub.f32 %v90, %v1230
    %1232 = vmatpush1.msra.mxu0 %v1231
    %1233 = vmatprep.subr.mxu0 0.0
    %v1234 = vand.u32 %v91, 4294901760
    %v1235 = vsub.f32 %v91, %v1234
    %1236 = vmatpush1.msra.mxu0 %v1235
    %1237 = vmatprep.subr.mxu0 0.0
    %v1238 = vand.u32 %v92, 4294901760
    %v1239 = vsub.f32 %v92, %v1238
    %1240 = vmatpush1.msra.mxu0 %v1239
    %1241 = vmatprep.subr.mxu0 0.0
    %v1242 = vand.u32 %v93, 4294901760
    %v1243 = vsub.f32 %v93, %v1242
    %1244 = vmatpush1.msra.mxu0 %v1243
    %1245 = vmatprep.subr.mxu0 0.0
    %v1246 = vand.u32 %v94, 4294901760
    %v1247 = vsub.f32 %v94, %v1246
    %1248 = vmatpush1.msra.mxu0 %v1247
    %1249 = vmatprep.subr.mxu0 0.0
    %v1250 = vand.u32 %v95, 4294901760
    %v1251 = vsub.f32 %v95, %v1250
    %1252 = vmatpush1.msra.mxu0 %v1251
    %1253 = vmatprep.subr.mxu0 0.0
    %v1254 = vand.u32 %v96, 4294901760
    %v1255 = vsub.f32 %v96, %v1254
    %1256 = vmatpush1.msra.mxu0 %v1255
    %1257 = vmatprep.subr.mxu0 0.0
    %v1258 = vand.u32 %v97, 4294901760
    %v1259 = vsub.f32 %v97, %v1258
    %1260 = vmatpush1.msra.mxu0 %v1259
    %1261 = vmatprep.subr.mxu0 0.0
    %v1262 = vand.u32 %v98, 4294901760
    %v1263 = vsub.f32 %v98, %v1262
    %1264 = vmatpush1.msra.mxu0 %v1263
    %1265 = vmatprep.subr.mxu0 0.0
    %v1266 = vand.u32 %v99, 4294901760
    %v1267 = vsub.f32 %v99, %v1266
    %1268 = vmatpush1.msra.mxu0 %v1267
    %1269 = vmatprep.subr.mxu0 0.0
    %v1270 = vand.u32 %v100, 4294901760
    %v1271 = vsub.f32 %v100, %v1270
    %1272 = vmatpush1.msra.mxu0 %v1271
    %1273 = vmatprep.subr.mxu0 0.0
    %v1274 = vand.u32 %v101, 4294901760
    %v1275 = vsub.f32 %v101, %v1274
    %1276 = vmatpush1.msra.mxu0 %v1275
    %1277 = vmatprep.subr.mxu0 0.0
    %v1278 = vand.u32 %v102, 4294901760
    %v1279 = vsub.f32 %v102, %v1278
    %1280 = vmatpush1.msra.mxu0 %v1279
    %1281 = vmatprep.subr.mxu0 0.0
    %1282 = vmatpush1.msra.mxu0 0.0
    %1283 = vmatprep.subr.mxu0 0.0
    %1284 = vmatpush1.msra.mxu0 0.0
    %1285 = vmatprep.subr.mxu0 0.0
    %1286 = vmatpush1.msra.mxu0 0.0
    %1287 = vmatprep.subr.mxu0 0.0
    %1288 = vmatpush1.msra.mxu0 0.0
    %1289 = vmatprep.subr.mxu0 0.0
    %1290 = vmatpush1.msra.mxu0 0.0
    %1291 = vmatprep.subr.mxu0 0.0
    %1292 = vmatpush1.msra.mxu0 0.0
    %1293 = vmatprep.subr.mxu0 0.0
    %1294 = vmatpush1.msra.mxu0 0.0
    %1295 = vmatprep.subr.mxu0 0.0
    %1296 = vmatpush1.msra.mxu0 0.0
    %v1297 = vand.u32 %v112, 4294901760
    %v1298 = vsub.f32 %v112, %v1297
    %1299 = vmatprep.mubr.f32.mxu0 %v1298
    %v1300 = vand.u32 %v15, 4294901760
    %v1301 = vsub.f32 %v15, %v1300
    %1302 = vmatmul.mubr.f32.gmra.mrb[0].mxu0 %v1301
    %v1303 = vpop.f32.mrb[0].mxu0
    %v1304 = vadd.f32 %v965, %v1303
    %v1305 = vpop.f32.mrb[0].mxu0
    %v1306 = vand.u32 %v115, 4294901760
    %v1307 = vsub.f32 %v115, %v1306
    %1308 = vmatprep.mubr.f32.mxu0 %v1307
    %v1309 = vand.u32 %v17, 4294901760
    %v1310 = vsub.f32 %v17, %v1309
    %1311 = vmatmul.mubr.f32.gmra.mrb[0].mxu0 %v1310
    %v1312 = vpop.f32.mrb[0].mxu0
    %v1313 = vadd.f32 %v972, %v1312
    %v1314 = vpop.f32.mrb[0].mxu0
    %v1315 = vand.u32 %v118, 4294901760
    %v1316 = vsub.f32 %v118, %v1315
    %1317 = vmatprep.mubr.f32.mxu0 %v1316
    %v1318 = vand.u32 %v19, 4294901760
    %v1319 = vsub.f32 %v19, %v1318
    %1320 = vmatmul.mubr.f32.gmra.mrb[0].mxu0 %v1319
    %v1321 = vpop.f32.mrb[0].mxu0
    %v1322 = vadd.f32 %v979, %v1321
    %v1323 = vpop.f32.mrb[0].mxu0
    %v1324 = vand.u32 %v121, 4294901760
    %v1325 = vsub.f32 %v121, %v1324
    %1326 = vmatprep.mubr.f32.mxu0 %v1325
    %v1327 = vand.u32 %v21, 4294901760
    %v1328 = vsub.f32 %v21, %v1327
    %1329 = vmatmul.mubr.f32.gmra.mrb[0].mxu0 %v1328
    %v1330 = vpop.f32.mrb[0].mxu0
    %v1331 = vadd.f32 %v986, %v1330
    %v1332 = vpop.f32.mrb[0].mxu0
    %v1333 = vand.u32 %v124, 4294901760
    %v1334 = vsub.f32 %v124, %v1333
    %1335 = vmatprep.mubr.f32.mxu0 %v1334
    %v1336 = vand.u32 %v23, 4294901760
    %v1337 = vsub.f32 %v23, %v1336
    %1338 = vmatmul.mubr.f32.gmra.mrb[0].mxu0 %v1337
    %v1339 = vpop.f32.mrb[0].mxu0
    %v1340 = vadd.f32 %v993, %v1339
    %v1341 = vpop.f32.mrb[0].mxu0
    %v1342 = vand.u32 %v127, 4294901760
    %v1343 = vsub.f32 %v127, %v1342
    %1344 = vmatprep.mubr.f32.mxu0 %v1343
    %v1345 = vand.u32 %v25, 4294901760
    %v1346 = vsub.f32 %v25, %v1345
    %1347 = vmatmul.mubr.f32.gmra.mrb[0].mxu0 %v1346
    %v1348 = vpop.f32.mrb[0].mxu0
    %v1349 = vadd.f32 %v1000, %v1348
    %v1350 = vpop.f32.mrb[0].mxu0
    %v1351 = vand.u32 %v130, 4294901760
    %v1352 = vsub.f32 %v130, %v1351
    %1353 = vmatprep.mubr.f32.mxu0 %v1352
    %v1354 = vand.u32 %v27, 4294901760
    %v1355 = vsub.f32 %v27, %v1354
    %1356 = vmatmul.mubr.f32.gmra.mrb[0].mxu0 %v1355
    %v1357 = vpop.f32.mrb[0].mxu0
    %v1358 = vadd.f32 %v1007, %v1357
    %v1359 = vpop.f32.mrb[0].mxu0
    %v1360 = vand.u32 %v133, 4294901760
    %v1361 = vsub.f32 %v133, %v1360
    %1362 = vmatprep.mubr.f32.mxu0 %v1361
    %v1363 = vand.u32 %v29, 4294901760
    %v1364 = vsub.f32 %v29, %v1363
    %1365 = vmatmul.mubr.f32.gmra.mrb[0].mxu0 %v1364
    %v1366 = vpop.f32.mrb[0].mxu0
    %v1367 = vadd.f32 %v1014, %v1366
    %v1368 = vpop.f32.mrb[0].mxu0
    %v1369 = vand.u32 %v136, 4294901760
    %v1370 = vsub.f32 %v136, %v1369
    %1371 = vmatprep.mubr.f32.mxu0 %v1370
    %v1372 = vand.u32 %v31, 4294901760
    %v1373 = vsub.f32 %v31, %v1372
    %1374 = vmatmul.mubr.f32.gmra.mrb[0].mxu0 %v1373
    %v1375 = vpop.f32.mrb[0].mxu0
    %v1376 = vadd.f32 %v1021, %v1375
    %v1377 = vpop.f32.mrb[0].mxu0
    %v1378 = vand.u32 %v139, 4294901760
    %v1379 = vsub.f32 %v139, %v1378
    %1380 = vmatprep.mubr.f32.mxu0 %v1379
    %v1381 = vand.u32 %v33, 4294901760
    %v1382 = vsub.f32 %v33, %v1381
    %1383 = vmatmul.mubr.f32.gmra.mrb[0].mxu0 %v1382
    %v1384 = vpop.f32.mrb[0].mxu0
    %v1385 = vadd.f32 %v1028, %v1384
    %v1386 = vpop.f32.mrb[0].mxu0
    %v1387 = vand.u32 %v142, 4294901760
    %v1388 = vsub.f32 %v142, %v1387
    %1389 = vmatprep.mubr.f32.mxu0 %v1388
    %v1390 = vand.u32 %v35, 4294901760
    %v1391 = vsub.f32 %v35, %v1390
    %1392 = vmatmul.mubr.f32.gmra.mrb[0].mxu0 %v1391
    %v1393 = vpop.f32.mrb[0].mxu0
    %v1394 = vadd.f32 %v1035, %v1393
    %v1395 = vpop.f32.mrb[0].mxu0
    %v1396 = vand.u32 %v145, 4294901760
    %v1397 = vsub.f32 %v145, %v1396
    %1398 = vmatprep.mubr.f32.mxu0 %v1397
    %v1399 = vand.u32 %v37, 4294901760
    %v1400 = vsub.f32 %v37, %v1399
    %1401 = vmatmul.mubr.f32.gmra.mrb[0].mxu0 %v1400
    %v1402 = vpop.f32.mrb[0].mxu0
    %v1403 = vadd.f32 %v1042, %v1402
    %v1404 = vpop.f32.mrb[0].mxu0
    %v1405 = vand.u32 %v148, 4294901760
    %v1406 = vsub.f32 %v148, %v1405
    %1407 = vmatprep.mubr.f32.mxu0 %v1406
    %v1408 = vand.u32 %v39, 4294901760
    %v1409 = vsub.f32 %v39, %v1408
    %1410 = vmatmul.mubr.f32.gmra.mrb[0].mxu0 %v1409
    %v1411 = vpop.f32.mrb[0].mxu0
    %v1412 = vadd.f32 %v1049, %v1411
    %v1413 = vpop.f32.mrb[0].mxu0
    %v1414 = vand.u32 %v151, 4294901760
    %v1415 = vsub.f32 %v151, %v1414
    %1416 = vmatprep.mubr.f32.mxu0 %v1415
    %v1417 = vand.u32 %v41, 4294901760
    %v1418 = vsub.f32 %v41, %v1417
    %1419 = vmatmul.mubr.f32.gmra.mrb[0].mxu0 %v1418
    %v1420 = vpop.f32.mrb[0].mxu0
    %v1421 = vadd.f32 %v1056, %v1420
    %v1422 = vpop.f32.mrb[0].mxu0
    %v1423 = vand.u32 %v154, 4294901760
    %v1424 = vsub.f32 %v154, %v1423
    %1425 = vmatprep.mubr.f32.mxu0 %v1424
    %v1426 = vand.u32 %v43, 4294901760
    %v1427 = vsub.f32 %v43, %v1426
    %1428 = vmatmul.mubr.f32.gmra.mrb[0].mxu0 %v1427
    %v1429 = vpop.f32.mrb[0].mxu0
    %v1430 = vadd.f32 %v1063, %v1429
    %v1431 = vpop.f32.mrb[0].mxu0
    %v1432 = vand.u32 %v157, 4294901760
    %v1433 = vsub.f32 %v157, %v1432
    %1434 = vmatprep.mubr.f32.mxu0 %v1433
    %v1435 = vand.u32 %v45, 4294901760
    %v1436 = vsub.f32 %v45, %v1435
    %1437 = vmatmul.mubr.f32.gmra.mrb[0].mxu0 %v1436
    %v1438 = vpop.f32.mrb[0].mxu0
    %v1439 = vadd.f32 %v1070, %v1438
    %v1440 = vpop.f32.mrb[0].mxu0
    %v1441 = vand.u32 %v160, 4294901760
    %v1442 = vsub.f32 %v160, %v1441
    %1443 = vmatprep.mubr.f32.mxu0 %v1442
    %v1444 = vand.u32 %v47, 4294901760
    %v1445 = vsub.f32 %v47, %v1444
    %1446 = vmatmul.mubr.f32.gmra.mrb[0].mxu0 %v1445
    %v1447 = vpop.f32.mrb[0].mxu0
    %v1448 = vadd.f32 %v1077, %v1447
    %v1449 = vpop.f32.mrb[0].mxu0
    %v1450 = vand.u32 %v163, 4294901760
    %v1451 = vsub.f32 %v163, %v1450
    %1452 = vmatprep.mubr.f32.mxu0 %v1451
    %v1453 = vand.u32 %v49, 4294901760
    %v1454 = vsub.f32 %v49, %v1453
    %1455 = vmatmul.mubr.f32.gmra.mrb[0].mxu0 %v1454
    %v1456 = vpop.f32.mrb[0].mxu0
    %v1457 = vadd.f32 %v1084, %v1456
    %v1458 = vpop.f32.mrb[0].mxu0
    %v1459 = vand.u32 %v166, 4294901760
    %v1460 = vsub.f32 %v166, %v1459
    %1461 = vmatprep.mubr.f32.mxu0 %v1460
    %v1462 = vand.u32 %v51, 4294901760
    %v1463 = vsub.f32 %v51, %v1462
    %1464 = vmatmul.mubr.f32.gmra.mrb[0].mxu0 %v1463
    %v1465 = vpop.f32.mrb[0].mxu0
    %v1466 = vadd.f32 %v1091, %v1465
    %v1467 = vpop.f32.mrb[0].mxu0
    %v1468 = vand.u32 %v169, 4294901760
    %v1469 = vsub.f32 %v169, %v1468
    %1470 = vmatprep.mubr.f32.mxu0 %v1469
    %v1471 = vand.u32 %v53, 4294901760
    %v1472 = vsub.f32 %v53, %v1471
    %1473 = vmatmul.mubr.f32.gmra.mrb[0].mxu0 %v1472
    %v1474 = vpop.f32.mrb[0].mxu0
    %v1475 = vadd.f32 %v1098, %v1474
    %v1476 = vpop.f32.mrb[0].mxu0
    %v1477 = vand.u32 %v172, 4294901760
    %v1478 = vsub.f32 %v172, %v1477
    %1479 = vmatprep.mubr.f32.mxu0 %v1478
    %v1480 = vand.u32 %v55, 4294901760
    %v1481 = vsub.f32 %v55, %v1480
    %1482 = vmatmul.mubr.f32.gmra.mrb[0].mxu0 %v1481
    %v1483 = vpop.f32.mrb[0].mxu0
    %v1484 = vadd.f32 %v1105, %v1483
    %v1485 = vpop.f32.mrb[0].mxu0
    %v1486 = vand.u32 %v175, 4294901760
    %v1487 = vsub.f32 %v175, %v1486
    %1488 = vmatprep.mubr.f32.mxu0 %v1487
    %v1489 = vand.u32 %v57, 4294901760
    %v1490 = vsub.f32 %v57, %v1489
    %1491 = vmatmul.mubr.f32.gmra.mrb[0].mxu0 %v1490
    %v1492 = vpop.f32.mrb[0].mxu0
    %v1493 = vadd.f32 %v1112, %v1492
    %v1494 = vpop.f32.mrb[0].mxu0
    %v1495 = vand.u32 %v178, 4294901760
    %v1496 = vsub.f32 %v178, %v1495
    %1497 = vmatprep.mubr.f32.mxu0 %v1496
    %v1498 = vand.u32 %v59, 4294901760
    %v1499 = vsub.f32 %v59, %v1498
    %1500 = vmatmul.mubr.f32.gmra.mrb[0].mxu0 %v1499
    %v1501 = vpop.f32.mrb[0].mxu0
    %v1502 = vadd.f32 %v1119, %v1501
    %v1503 = vpop.f32.mrb[0].mxu0
    %v1504 = vand.u32 %v181, 4294901760
    %v1505 = vsub.f32 %v181, %v1504
    %1506 = vmatprep.mubr.f32.mxu0 %v1505
    %v1507 = vand.u32 %v61, 4294901760
    %v1508 = vsub.f32 %v61, %v1507
    %1509 = vmatmul.mubr.f32.gmra.mrb[0].mxu0 %v1508
    %v1510 = vpop.f32.mrb[0].mxu0
    %v1511 = vadd.f32 %v1126, %v1510
    %v1512 = vpop.f32.mrb[0].mxu0
    %v1513 = vand.u32 %v184, 4294901760
    %v1514 = vsub.f32 %v184, %v1513
    %1515 = vmatprep.mubr.f32.mxu0 %v1514
    %v1516 = vand.u32 %v63, 4294901760
    %v1517 = vsub.f32 %v63, %v1516
    %1518 = vmatmul.mubr.f32.gmra.mrb[0].mxu0 %v1517
    %v1519 = vpop.f32.mrb[0].mxu0
    %v1520 = vadd.f32 %v1133, %v1519
    %v1521 = vpop.f32.mrb[0].mxu0
    %v1522 = vand.u32 %v187, 4294901760
    %v1523 = vsub.f32 %v187, %v1522
    %1524 = vmatprep.mubr.f32.mxu0 %v1523
    %v1525 = vand.u32 %v65, 4294901760
    %v1526 = vsub.f32 %v65, %v1525
    %1527 = vmatmul.mubr.f32.gmra.mrb[0].mxu0 %v1526
    %v1528 = vpop.f32.mrb[0].mxu0
    %v1529 = vadd.f32 %v1140, %v1528
    %v1530 = vpop.f32.mrb[0].mxu0
    %v1531 = vand.u32 %v190, 4294901760
    %v1532 = vsub.f32 %v190, %v1531
    %1533 = vmatprep.mubr.f32.mxu0 %v1532
    %v1534 = vand.u32 %v67, 4294901760
    %v1535 = vsub.f32 %v67, %v1534
    %1536 = vmatmul.mubr.f32.gmra.mrb[0].mxu0 %v1535
    %v1537 = vpop.f32.mrb[0].mxu0
    %v1538 = vadd.f32 %v1147, %v1537
    %v1539 = vpop.f32.mrb[0].mxu0
    %v1540 = vand.u32 %v193, 4294901760
    %v1541 = vsub.f32 %v193, %v1540
    %1542 = vmatprep.mubr.f32.mxu0 %v1541
    %v1543 = vand.u32 %v69, 4294901760
    %v1544 = vsub.f32 %v69, %v1543
    %1545 = vmatmul.mubr.f32.gmra.mrb[0].mxu0 %v1544
    %v1546 = vpop.f32.mrb[0].mxu0
    %v1547 = vadd.f32 %v1154, %v1546
    %v1548 = vpop.f32.mrb[0].mxu0
    %v1549 = vand.u32 %v196, 4294901760
    %v1550 = vsub.f32 %v196, %v1549
    %1551 = vmatprep.mubr.f32.mxu0 %v1550
    %v1552 = vand.u32 %v71, 4294901760
    %v1553 = vsub.f32 %v71, %v1552
    %1554 = vmatmul.mubr.f32.gmra.mrb[0].mxu0 %v1553
    %v1555 = vpop.f32.mrb[0].mxu0
    %v1556 = vadd.f32 %v1161, %v1555
    %v1557 = vpop.f32.mrb[0].mxu0
    %v1558 = vand.u32 %v199, 4294901760
    %v1559 = vsub.f32 %v199, %v1558
    %1560 = vmatprep.mubr.f32.mxu0 %v1559
    %v1561 = vand.u32 %v73, 4294901760
    %v1562 = vsub.f32 %v73, %v1561
    %1563 = vmatmul.mubr.f32.gmra.mrb[0].mxu0 %v1562
    %v1564 = vpop.f32.mrb[0].mxu0
    %v1565 = vadd.f32 %v1168, %v1564
    %v1566 = vpop.f32.mrb[0].mxu0
    %v1567 = vand.u32 %v202, 4294901760
    %v1568 = vsub.f32 %v202, %v1567
    %1569 = vmatprep.mubr.f32.mxu0 %v1568
    %v1570 = vand.u32 %v75, 4294901760
    %v1571 = vsub.f32 %v75, %v1570
    %1572 = vmatmul.mubr.f32.gmra.mrb[0].mxu0 %v1571
    %v1573 = vpop.f32.mrb[0].mxu0
    %v1574 = vadd.f32 %v1175, %v1573
    %v1575 = vpop.f32.mrb[0].mxu0
    %v1576 = vand.u32 %v205, 4294901760
    %v1577 = vsub.f32 %v205, %v1576
    %1578 = vmatprep.mubr.f32.mxu0 %v1577
    %v1579 = vand.u32 %v77, 4294901760
    %v1580 = vsub.f32 %v77, %v1579
    %1581 = vmatmul.mubr.f32.gmra.mrb[0].mxu0 %v1580
    %v1582 = vpop.f32.mrb[0].mxu0
    %v1583 = vadd.f32 %v1182, %v1582
    %v1584 = vpop.f32.mrb[0].mxu0
    %1585 = vdwg.mxu0
    %1586 = vmatprep.subr.mxu0 0.0
    %v1587 = vand.u32 %v79, 4294901760
    %1588 = vmatpush1.msra.mxu0 %v1587
    %1589 = vmatprep.subr.mxu0 0.0
    %v1590 = vand.u32 %v80, 4294901760
    %1591 = vmatpush1.msra.mxu0 %v1590
    %1592 = vmatprep.subr.mxu0 0.0
    %v1593 = vand.u32 %v81, 4294901760
    %1594 = vmatpush1.msra.mxu0 %v1593
    %1595 = vmatprep.subr.mxu0 0.0
    %v1596 = vand.u32 %v82, 4294901760
    %1597 = vmatpush1.msra.mxu0 %v1596
    %1598 = vmatprep.subr.mxu0 0.0
    %v1599 = vand.u32 %v83, 4294901760
    %1600 = vmatpush1.msra.mxu0 %v1599
    %1601 = vmatprep.subr.mxu0 0.0
    %v1602 = vand.u32 %v84, 4294901760
    %1603 = vmatpush1.msra.mxu0 %v1602
    %1604 = vmatprep.subr.mxu0 0.0
    %v1605 = vand.u32 %v85, 4294901760
    %1606 = vmatpush1.msra.mxu0 %v1605
    %1607 = vmatprep.subr.mxu0 0.0
    %v1608 = vand.u32 %v86, 4294901760
    %1609 = vmatpush1.msra.mxu0 %v1608
    %1610 = vmatprep.subr.mxu0 0.0
    %v1611 = vand.u32 %v87, 4294901760
    %1612 = vmatpush1.msra.mxu0 %v1611
    %1613 = vmatprep.subr.mxu0 0.0
    %v1614 = vand.u32 %v88, 4294901760
    %1615 = vmatpush1.msra.mxu0 %v1614
    %1616 = vmatprep.subr.mxu0 0.0
    %v1617 = vand.u32 %v89, 4294901760
    %1618 = vmatpush1.msra.mxu0 %v1617
    %1619 = vmatprep.subr.mxu0 0.0
    %v1620 = vand.u32 %v90, 4294901760
    %1621 = vmatpush1.msra.mxu0 %v1620
    %1622 = vmatprep.subr.mxu0 0.0
    %v1623 = vand.u32 %v91, 4294901760
    %1624 = vmatpush1.msra.mxu0 %v1623
    %1625 = vmatprep.subr.mxu0 0.0
    %v1626 = vand.u32 %v92, 4294901760
    %1627 = vmatpush1.msra.mxu0 %v1626
    %1628 = vmatprep.subr.mxu0 0.0
    %v1629 = vand.u32 %v93, 4294901760
    %1630 = vmatpush1.msra.mxu0 %v1629
    %1631 = vmatprep.subr.mxu0 0.0
    %v1632 = vand.u32 %v94, 4294901760
    %1633 = vmatpush1.msra.mxu0 %v1632
    %1634 = vmatprep.subr.mxu0 0.0
    %v1635 = vand.u32 %v95, 4294901760
    %1636 = vmatpush1.msra.mxu0 %v1635
    %1637 = vmatprep.subr.mxu0 0.0
    %v1638 = vand.u32 %v96, 4294901760
    %1639 = vmatpush1.msra.mxu0 %v1638
    %1640 = vmatprep.subr.mxu0 0.0
    %v1641 = vand.u32 %v97, 4294901760
    %1642 = vmatpush1.msra.mxu0 %v1641
    %1643 = vmatprep.subr.mxu0 0.0
    %v1644 = vand.u32 %v98, 4294901760
    %1645 = vmatpush1.msra.mxu0 %v1644
    %1646 = vmatprep.subr.mxu0 0.0
    %v1647 = vand.u32 %v99, 4294901760
    %1648 = vmatpush1.msra.mxu0 %v1647
    %1649 = vmatprep.subr.mxu0 0.0
    %v1650 = vand.u32 %v100, 4294901760
    %1651 = vmatpush1.msra.mxu0 %v1650
    %1652 = vmatprep.subr.mxu0 0.0
    %v1653 = vand.u32 %v101, 4294901760
    %1654 = vmatpush1.msra.mxu0 %v1653
    %1655 = vmatprep.subr.mxu0 0.0
    %v1656 = vand.u32 %v102, 4294901760
    %1657 = vmatpush1.msra.mxu0 %v1656
    %1658 = vmatprep.subr.mxu0 0.0
    %1659 = vmatpush1.msra.mxu0 0.0
    %1660 = vmatprep.subr.mxu0 0.0
    %1661 = vmatpush1.msra.mxu0 0.0
    %1662 = vmatprep.subr.mxu0 0.0
    %1663 = vmatpush1.msra.mxu0 0.0
    %1664 = vmatprep.subr.mxu0 0.0
    %1665 = vmatpush1.msra.mxu0 0.0
    %1666 = vmatprep.subr.mxu0 0.0
    %1667 = vmatpush1.msra.mxu0 0.0
    %1668 = vmatprep.subr.mxu0 0.0
    %1669 = vmatpush1.msra.mxu0 0.0
    %1670 = vmatprep.subr.mxu0 0.0
    %1671 = vmatpush1.msra.mxu0 0.0
    %1672 = vmatprep.subr.mxu0 0.0
    %1673 = vmatpush1.msra.mxu0 0.0
    %v1674 = vand.u32 %v112, 4294901760
    %v1675 = vsub.f32 %v112, %v1674
    %v1676 = vand.u32 %v1675, 4294901760
    %1677 = vmatprep.mubr.f32.mxu0 %v1676
    %v1678 = vand.u32 %v15, 4294901760
    %v1679 = vsub.f32 %v15, %v1678
    %v1680 = vand.u32 %v1679, 4294901760
    %1681 = vmatmul.mubr.f32.gmra.mrb[0].mxu0 %v1680
    %v1682 = vpop.f32.mrb[0].mxu0
    %v1683 = vadd.f32 %v1304, %v1682
    %v1684 = vpop.f32.mrb[0].mxu0
    %v1685 = vand.u32 %v115, 4294901760
    %v1686 = vsub.f32 %v115, %v1685
    %v1687 = vand.u32 %v1686, 4294901760
    %1688 = vmatprep.mubr.f32.mxu0 %v1687
    %v1689 = vand.u32 %v17, 4294901760
    %v1690 = vsub.f32 %v17, %v1689
    %v1691 = vand.u32 %v1690, 4294901760
    %1692 = vmatmul.mubr.f32.gmra.mrb[0].mxu0 %v1691
    %v1693 = vpop.f32.mrb[0].mxu0
    %v1694 = vadd.f32 %v1313, %v1693
    %v1695 = vpop.f32.mrb[0].mxu0
    %v1696 = vand.u32 %v118, 4294901760
    %v1697 = vsub.f32 %v118, %v1696
    %v1698 = vand.u32 %v1697, 4294901760
    %1699 = vmatprep.mubr.f32.mxu0 %v1698
    %v1700 = vand.u32 %v19, 4294901760
    %v1701 = vsub.f32 %v19, %v1700
    %v1702 = vand.u32 %v1701, 4294901760
    %1703 = vmatmul.mubr.f32.gmra.mrb[0].mxu0 %v1702
    %v1704 = vpop.f32.mrb[0].mxu0
    %v1705 = vadd.f32 %v1322, %v1704
    %v1706 = vpop.f32.mrb[0].mxu0
    %v1707 = vand.u32 %v121, 4294901760
    %v1708 = vsub.f32 %v121, %v1707
    %v1709 = vand.u32 %v1708, 4294901760
    %1710 = vmatprep.mubr.f32.mxu0 %v1709
    %v1711 = vand.u32 %v21, 4294901760
    %v1712 = vsub.f32 %v21, %v1711
    %v1713 = vand.u32 %v1712, 4294901760
    %1714 = vmatmul.mubr.f32.gmra.mrb[0].mxu0 %v1713
    %v1715 = vpop.f32.mrb[0].mxu0
    %v1716 = vadd.f32 %v1331, %v1715
    %v1717 = vpop.f32.mrb[0].mxu0
    %v1718 = vand.u32 %v124, 4294901760
    %v1719 = vsub.f32 %v124, %v1718
    %v1720 = vand.u32 %v1719, 4294901760
    %1721 = vmatprep.mubr.f32.mxu0 %v1720
    %v1722 = vand.u32 %v23, 4294901760
    %v1723 = vsub.f32 %v23, %v1722
    %v1724 = vand.u32 %v1723, 4294901760
    %1725 = vmatmul.mubr.f32.gmra.mrb[0].mxu0 %v1724
    %v1726 = vpop.f32.mrb[0].mxu0
    %v1727 = vadd.f32 %v1340, %v1726
    %v1728 = vpop.f32.mrb[0].mxu0
    %v1729 = vand.u32 %v127, 4294901760
    %v1730 = vsub.f32 %v127, %v1729
    %v1731 = vand.u32 %v1730, 4294901760
    %1732 = vmatprep.mubr.f32.mxu0 %v1731
    %v1733 = vand.u32 %v25, 4294901760
    %v1734 = vsub.f32 %v25, %v1733
    %v1735 = vand.u32 %v1734, 4294901760
    %1736 = vmatmul.mubr.f32.gmra.mrb[0].mxu0 %v1735
    %v1737 = vpop.f32.mrb[0].mxu0
    %v1738 = vadd.f32 %v1349, %v1737
    %v1739 = vpop.f32.mrb[0].mxu0
    %v1740 = vand.u32 %v130, 4294901760
    %v1741 = vsub.f32 %v130, %v1740
    %v1742 = vand.u32 %v1741, 4294901760
    %1743 = vmatprep.mubr.f32.mxu0 %v1742
    %v1744 = vand.u32 %v27, 4294901760
    %v1745 = vsub.f32 %v27, %v1744
    %v1746 = vand.u32 %v1745, 4294901760
    %1747 = vmatmul.mubr.f32.gmra.mrb[0].mxu0 %v1746
    %v1748 = vpop.f32.mrb[0].mxu0
    %v1749 = vadd.f32 %v1358, %v1748
    %v1750 = vpop.f32.mrb[0].mxu0
    %v1751 = vand.u32 %v133, 4294901760
    %v1752 = vsub.f32 %v133, %v1751
    %v1753 = vand.u32 %v1752, 4294901760
    %1754 = vmatprep.mubr.f32.mxu0 %v1753
    %v1755 = vand.u32 %v29, 4294901760
    %v1756 = vsub.f32 %v29, %v1755
    %v1757 = vand.u32 %v1756, 4294901760
    %1758 = vmatmul.mubr.f32.gmra.mrb[0].mxu0 %v1757
    %v1759 = vpop.f32.mrb[0].mxu0
    %v1760 = vadd.f32 %v1367, %v1759
    %v1761 = vpop.f32.mrb[0].mxu0
    %v1762 = vand.u32 %v136, 4294901760
    %v1763 = vsub.f32 %v136, %v1762
    %v1764 = vand.u32 %v1763, 4294901760
    %1765 = vmatprep.mubr.f32.mxu0 %v1764
    %v1766 = vand.u32 %v31, 4294901760
    %v1767 = vsub.f32 %v31, %v1766
    %v1768 = vand.u32 %v1767, 4294901760
    %1769 = vmatmul.mubr.f32.gmra.mrb[0].mxu0 %v1768
    %v1770 = vpop.f32.mrb[0].mxu0
    %v1771 = vadd.f32 %v1376, %v1770
    %v1772 = vpop.f32.mrb[0].mxu0
    %v1773 = vand.u32 %v139, 4294901760
    %v1774 = vsub.f32 %v139, %v1773
    %v1775 = vand.u32 %v1774, 4294901760
    %1776 = vmatprep.mubr.f32.mxu0 %v1775
    %v1777 = vand.u32 %v33, 4294901760
    %v1778 = vsub.f32 %v33, %v1777
    %v1779 = vand.u32 %v1778, 4294901760
    %1780 = vmatmul.mubr.f32.gmra.mrb[0].mxu0 %v1779
    %v1781 = vpop.f32.mrb[0].mxu0
    %v1782 = vadd.f32 %v1385, %v1781
    %v1783 = vpop.f32.mrb[0].mxu0
    %v1784 = vand.u32 %v142, 4294901760
    %v1785 = vsub.f32 %v142, %v1784
    %v1786 = vand.u32 %v1785, 4294901760
    %1787 = vmatprep.mubr.f32.mxu0 %v1786
    %v1788 = vand.u32 %v35, 4294901760
    %v1789 = vsub.f32 %v35, %v1788
    %v1790 = vand.u32 %v1789, 4294901760
    %1791 = vmatmul.mubr.f32.gmra.mrb[0].mxu0 %v1790
    %v1792 = vpop.f32.mrb[0].mxu0
    %v1793 = vadd.f32 %v1394, %v1792
    %v1794 = vpop.f32.mrb[0].mxu0
    %v1795 = vand.u32 %v145, 4294901760
    %v1796 = vsub.f32 %v145, %v1795
    %v1797 = vand.u32 %v1796, 4294901760
    %1798 = vmatprep.mubr.f32.mxu0 %v1797
    %v1799 = vand.u32 %v37, 4294901760
    %v1800 = vsub.f32 %v37, %v1799
    %v1801 = vand.u32 %v1800, 4294901760
    %1802 = vmatmul.mubr.f32.gmra.mrb[0].mxu0 %v1801
    %v1803 = vpop.f32.mrb[0].mxu0
    %v1804 = vadd.f32 %v1403, %v1803
    %v1805 = vpop.f32.mrb[0].mxu0
    %v1806 = vand.u32 %v148, 4294901760
    %v1807 = vsub.f32 %v148, %v1806
    %v1808 = vand.u32 %v1807, 4294901760
    %1809 = vmatprep.mubr.f32.mxu0 %v1808
    %v1810 = vand.u32 %v39, 4294901760
    %v1811 = vsub.f32 %v39, %v1810
    %v1812 = vand.u32 %v1811, 4294901760
    %1813 = vmatmul.mubr.f32.gmra.mrb[0].mxu0 %v1812
    %v1814 = vpop.f32.mrb[0].mxu0
    %v1815 = vadd.f32 %v1412, %v1814
    %v1816 = vpop.f32.mrb[0].mxu0
    %v1817 = vand.u32 %v151, 4294901760
    %v1818 = vsub.f32 %v151, %v1817
    %v1819 = vand.u32 %v1818, 4294901760
    %1820 = vmatprep.mubr.f32.mxu0 %v1819
    %v1821 = vand.u32 %v41, 4294901760
    %v1822 = vsub.f32 %v41, %v1821
    %v1823 = vand.u32 %v1822, 4294901760
    %1824 = vmatmul.mubr.f32.gmra.mrb[0].mxu0 %v1823
    %v1825 = vpop.f32.mrb[0].mxu0
    %v1826 = vadd.f32 %v1421, %v1825
    %v1827 = vpop.f32.mrb[0].mxu0
    %v1828 = vand.u32 %v154, 4294901760
    %v1829 = vsub.f32 %v154, %v1828
    %v1830 = vand.u32 %v1829, 4294901760
    %1831 = vmatprep.mubr.f32.mxu0 %v1830
    %v1832 = vand.u32 %v43, 4294901760
    %v1833 = vsub.f32 %v43, %v1832
    %v1834 = vand.u32 %v1833, 4294901760
    %1835 = vmatmul.mubr.f32.gmra.mrb[0].mxu0 %v1834
    %v1836 = vpop.f32.mrb[0].mxu0
    %v1837 = vadd.f32 %v1430, %v1836
    %v1838 = vpop.f32.mrb[0].mxu0
    %v1839 = vand.u32 %v157, 4294901760
    %v1840 = vsub.f32 %v157, %v1839
    %v1841 = vand.u32 %v1840, 4294901760
    %1842 = vmatprep.mubr.f32.mxu0 %v1841
    %v1843 = vand.u32 %v45, 4294901760
    %v1844 = vsub.f32 %v45, %v1843
    %v1845 = vand.u32 %v1844, 4294901760
    %1846 = vmatmul.mubr.f32.gmra.mrb[0].mxu0 %v1845
    %v1847 = vpop.f32.mrb[0].mxu0
    %v1848 = vadd.f32 %v1439, %v1847
    %v1849 = vpop.f32.mrb[0].mxu0
    %v1850 = vand.u32 %v160, 4294901760
    %v1851 = vsub.f32 %v160, %v1850
    %v1852 = vand.u32 %v1851, 4294901760
    %1853 = vmatprep.mubr.f32.mxu0 %v1852
    %v1854 = vand.u32 %v47, 4294901760
    %v1855 = vsub.f32 %v47, %v1854
    %v1856 = vand.u32 %v1855, 4294901760
    %1857 = vmatmul.mubr.f32.gmra.mrb[0].mxu0 %v1856
    %v1858 = vpop.f32.mrb[0].mxu0
    %v1859 = vadd.f32 %v1448, %v1858
    %v1860 = vpop.f32.mrb[0].mxu0
    %v1861 = vand.u32 %v163, 4294901760
    %v1862 = vsub.f32 %v163, %v1861
    %v1863 = vand.u32 %v1862, 4294901760
    %1864 = vmatprep.mubr.f32.mxu0 %v1863
    %v1865 = vand.u32 %v49, 4294901760
    %v1866 = vsub.f32 %v49, %v1865
    %v1867 = vand.u32 %v1866, 4294901760
    %1868 = vmatmul.mubr.f32.gmra.mrb[0].mxu0 %v1867
    %v1869 = vpop.f32.mrb[0].mxu0
    %v1870 = vadd.f32 %v1457, %v1869
    %v1871 = vpop.f32.mrb[0].mxu0
    %v1872 = vand.u32 %v166, 4294901760
    %v1873 = vsub.f32 %v166, %v1872
    %v1874 = vand.u32 %v1873, 4294901760
    %1875 = vmatprep.mubr.f32.mxu0 %v1874
    %v1876 = vand.u32 %v51, 4294901760
    %v1877 = vsub.f32 %v51, %v1876
    %v1878 = vand.u32 %v1877, 4294901760
    %1879 = vmatmul.mubr.f32.gmra.mrb[0].mxu0 %v1878
    %v1880 = vpop.f32.mrb[0].mxu0
    %v1881 = vadd.f32 %v1466, %v1880
    %v1882 = vpop.f32.mrb[0].mxu0
    %v1883 = vand.u32 %v169, 4294901760
    %v1884 = vsub.f32 %v169, %v1883
    %v1885 = vand.u32 %v1884, 4294901760
    %1886 = vmatprep.mubr.f32.mxu0 %v1885
    %v1887 = vand.u32 %v53, 4294901760
    %v1888 = vsub.f32 %v53, %v1887
    %v1889 = vand.u32 %v1888, 4294901760
    %1890 = vmatmul.mubr.f32.gmra.mrb[0].mxu0 %v1889
    %v1891 = vpop.f32.mrb[0].mxu0
    %v1892 = vadd.f32 %v1475, %v1891
    %v1893 = vpop.f32.mrb[0].mxu0
    %v1894 = vand.u32 %v172, 4294901760
    %v1895 = vsub.f32 %v172, %v1894
    %v1896 = vand.u32 %v1895, 4294901760
    %1897 = vmatprep.mubr.f32.mxu0 %v1896
    %v1898 = vand.u32 %v55, 4294901760
    %v1899 = vsub.f32 %v55, %v1898
    %v1900 = vand.u32 %v1899, 4294901760
    %1901 = vmatmul.mubr.f32.gmra.mrb[0].mxu0 %v1900
    %v1902 = vpop.f32.mrb[0].mxu0
    %v1903 = vadd.f32 %v1484, %v1902
    %v1904 = vpop.f32.mrb[0].mxu0
    %v1905 = vand.u32 %v175, 4294901760
    %v1906 = vsub.f32 %v175, %v1905
    %v1907 = vand.u32 %v1906, 4294901760
    %1908 = vmatprep.mubr.f32.mxu0 %v1907
    %v1909 = vand.u32 %v57, 4294901760
    %v1910 = vsub.f32 %v57, %v1909
    %v1911 = vand.u32 %v1910, 4294901760
    %1912 = vmatmul.mubr.f32.gmra.mrb[0].mxu0 %v1911
    %v1913 = vpop.f32.mrb[0].mxu0
    %v1914 = vadd.f32 %v1493, %v1913
    %v1915 = vpop.f32.mrb[0].mxu0
    %v1916 = vand.u32 %v178, 4294901760
    %v1917 = vsub.f32 %v178, %v1916
    %v1918 = vand.u32 %v1917, 4294901760
    %1919 = vmatprep.mubr.f32.mxu0 %v1918
    %v1920 = vand.u32 %v59, 4294901760
    %v1921 = vsub.f32 %v59, %v1920
    %v1922 = vand.u32 %v1921, 4294901760
    %1923 = vmatmul.mubr.f32.gmra.mrb[0].mxu0 %v1922
    %v1924 = vpop.f32.mrb[0].mxu0
    %v1925 = vadd.f32 %v1502, %v1924
    %v1926 = vpop.f32.mrb[0].mxu0
    %v1927 = vand.u32 %v181, 4294901760
    %v1928 = vsub.f32 %v181, %v1927
    %v1929 = vand.u32 %v1928, 4294901760
    %1930 = vmatprep.mubr.f32.mxu0 %v1929
    %v1931 = vand.u32 %v61, 4294901760
    %v1932 = vsub.f32 %v61, %v1931
    %v1933 = vand.u32 %v1932, 4294901760
    %1934 = vmatmul.mubr.f32.gmra.mrb[0].mxu0 %v1933
    %v1935 = vpop.f32.mrb[0].mxu0
    %v1936 = vadd.f32 %v1511, %v1935
    %v1937 = vpop.f32.mrb[0].mxu0
    %v1938 = vand.u32 %v184, 4294901760
    %v1939 = vsub.f32 %v184, %v1938
    %v1940 = vand.u32 %v1939, 4294901760
    %1941 = vmatprep.mubr.f32.mxu0 %v1940
    %v1942 = vand.u32 %v63, 4294901760
    %v1943 = vsub.f32 %v63, %v1942
    %v1944 = vand.u32 %v1943, 4294901760
    %1945 = vmatmul.mubr.f32.gmra.mrb[0].mxu0 %v1944
    %v1946 = vpop.f32.mrb[0].mxu0
    %v1947 = vadd.f32 %v1520, %v1946
    %v1948 = vpop.f32.mrb[0].mxu0
    %v1949 = vand.u32 %v187, 4294901760
    %v1950 = vsub.f32 %v187, %v1949
    %v1951 = vand.u32 %v1950, 4294901760
    %1952 = vmatprep.mubr.f32.mxu0 %v1951
    %v1953 = vand.u32 %v65, 4294901760
    %v1954 = vsub.f32 %v65, %v1953
    %v1955 = vand.u32 %v1954, 4294901760
    %1956 = vmatmul.mubr.f32.gmra.mrb[0].mxu0 %v1955
    %v1957 = vpop.f32.mrb[0].mxu0
    %v1958 = vadd.f32 %v1529, %v1957
    %v1959 = vpop.f32.mrb[0].mxu0
    %v1960 = vand.u32 %v190, 4294901760
    %v1961 = vsub.f32 %v190, %v1960
    %v1962 = vand.u32 %v1961, 4294901760
    %1963 = vmatprep.mubr.f32.mxu0 %v1962
    %v1964 = vand.u32 %v67, 4294901760
    %v1965 = vsub.f32 %v67, %v1964
    %v1966 = vand.u32 %v1965, 4294901760
    %1967 = vmatmul.mubr.f32.gmra.mrb[0].mxu0 %v1966
    %v1968 = vpop.f32.mrb[0].mxu0
    %v1969 = vadd.f32 %v1538, %v1968
    %v1970 = vpop.f32.mrb[0].mxu0
    %v1971 = vand.u32 %v193, 4294901760
    %v1972 = vsub.f32 %v193, %v1971
    %v1973 = vand.u32 %v1972, 4294901760
    %1974 = vmatprep.mubr.f32.mxu0 %v1973
    %v1975 = vand.u32 %v69, 4294901760
    %v1976 = vsub.f32 %v69, %v1975
    %v1977 = vand.u32 %v1976, 4294901760
    %1978 = vmatmul.mubr.f32.gmra.mrb[0].mxu0 %v1977
    %v1979 = vpop.f32.mrb[0].mxu0
    %v1980 = vadd.f32 %v1547, %v1979
    %v1981 = vpop.f32.mrb[0].mxu0
    %v1982 = vand.u32 %v196, 4294901760
    %v1983 = vsub.f32 %v196, %v1982
    %v1984 = vand.u32 %v1983, 4294901760
    %1985 = vmatprep.mubr.f32.mxu0 %v1984
    %v1986 = vand.u32 %v71, 4294901760
    %v1987 = vsub.f32 %v71, %v1986
    %v1988 = vand.u32 %v1987, 4294901760
    %1989 = vmatmul.mubr.f32.gmra.mrb[0].mxu0 %v1988
    %v1990 = vpop.f32.mrb[0].mxu0
    %v1991 = vadd.f32 %v1556, %v1990
    %v1992 = vpop.f32.mrb[0].mxu0
    %v1993 = vand.u32 %v199, 4294901760
    %v1994 = vsub.f32 %v199, %v1993
    %v1995 = vand.u32 %v1994, 4294901760
    %1996 = vmatprep.mubr.f32.mxu0 %v1995
    %v1997 = vand.u32 %v73, 4294901760
    %v1998 = vsub.f32 %v73, %v1997
    %v1999 = vand.u32 %v1998, 4294901760
    %2000 = vmatmul.mubr.f32.gmra.mrb[0].mxu0 %v1999
    %v2001 = vpop.f32.mrb[0].mxu0
    %v2002 = vadd.f32 %v1565, %v2001
    %v2003 = vpop.f32.mrb[0].mxu0
    %v2004 = vand.u32 %v202, 4294901760
    %v2005 = vsub.f32 %v202, %v2004
    %v2006 = vand.u32 %v2005, 4294901760
    %2007 = vmatprep.mubr.f32.mxu0 %v2006
    %v2008 = vand.u32 %v75, 4294901760
    %v2009 = vsub.f32 %v75, %v2008
    %v2010 = vand.u32 %v2009, 4294901760
    %2011 = vmatmul.mubr.f32.gmra.mrb[0].mxu0 %v2010
    %v2012 = vpop.f32.mrb[0].mxu0
    %v2013 = vadd.f32 %v1574, %v2012
    %v2014 = vpop.f32.mrb[0].mxu0
    %v2015 = vand.u32 %v205, 4294901760
    %v2016 = vsub.f32 %v205, %v2015
    %v2017 = vand.u32 %v2016, 4294901760
    %2018 = vmatprep.mubr.f32.mxu0 %v2017
    %v2019 = vand.u32 %v77, 4294901760
    %v2020 = vsub.f32 %v77, %v2019
    %v2021 = vand.u32 %v2020, 4294901760
    %2022 = vmatmul.mubr.f32.gmra.mrb[0].mxu0 %v2021
    %v2023 = vpop.f32.mrb[0].mxu0
    %v2024 = vadd.f32 %v1583, %v2023
    %v2025 = vpop.f32.mrb[0].mxu0
    %2026 = vdwg.mxu0
    %2027 = vmatprep.subr.mxu0 0.0
    %v2028 = vand.u32 %v79, 4294901760
    %v2029 = vsub.f32 %v79, %v2028
    %v2030 = vand.u32 %v2029, 4294901760
    %2031 = vmatpush1.msra.mxu0 %v2030
    %2032 = vmatprep.subr.mxu0 0.0
    %v2033 = vand.u32 %v80, 4294901760
    %v2034 = vsub.f32 %v80, %v2033
    %v2035 = vand.u32 %v2034, 4294901760
    %2036 = vmatpush1.msra.mxu0 %v2035
    %2037 = vmatprep.subr.mxu0 0.0
    %v2038 = vand.u32 %v81, 4294901760
    %v2039 = vsub.f32 %v81, %v2038
    %v2040 = vand.u32 %v2039, 4294901760
    %2041 = vmatpush1.msra.mxu0 %v2040
    %2042 = vmatprep.subr.mxu0 0.0
    %v2043 = vand.u32 %v82, 4294901760
    %v2044 = vsub.f32 %v82, %v2043
    %v2045 = vand.u32 %v2044, 4294901760
    %2046 = vmatpush1.msra.mxu0 %v2045
    %2047 = vmatprep.subr.mxu0 0.0
    %v2048 = vand.u32 %v83, 4294901760
    %v2049 = vsub.f32 %v83, %v2048
    %v2050 = vand.u32 %v2049, 4294901760
    %2051 = vmatpush1.msra.mxu0 %v2050
    %2052 = vmatprep.subr.mxu0 0.0
    %v2053 = vand.u32 %v84, 4294901760
    %v2054 = vsub.f32 %v84, %v2053
    %v2055 = vand.u32 %v2054, 4294901760
    %2056 = vmatpush1.msra.mxu0 %v2055
    %2057 = vmatprep.subr.mxu0 0.0
    %v2058 = vand.u32 %v85, 4294901760
    %v2059 = vsub.f32 %v85, %v2058
    %v2060 = vand.u32 %v2059, 4294901760
    %2061 = vmatpush1.msra.mxu0 %v2060
    %2062 = vmatprep.subr.mxu0 0.0
    %v2063 = vand.u32 %v86, 4294901760
    %v2064 = vsub.f32 %v86, %v2063
    %v2065 = vand.u32 %v2064, 4294901760
    %2066 = vmatpush1.msra.mxu0 %v2065
    %2067 = vmatprep.subr.mxu0 0.0
    %v2068 = vand.u32 %v87, 4294901760
    %v2069 = vsub.f32 %v87, %v2068
    %v2070 = vand.u32 %v2069, 4294901760
    %2071 = vmatpush1.msra.mxu0 %v2070
    %2072 = vmatprep.subr.mxu0 0.0
    %v2073 = vand.u32 %v88, 4294901760
    %v2074 = vsub.f32 %v88, %v2073
    %v2075 = vand.u32 %v2074, 4294901760
    %2076 = vmatpush1.msra.mxu0 %v2075
    %2077 = vmatprep.subr.mxu0 0.0
    %v2078 = vand.u32 %v89, 4294901760
    %v2079 = vsub.f32 %v89, %v2078
    %v2080 = vand.u32 %v2079, 4294901760
    %2081 = vmatpush1.msra.mxu0 %v2080
    %2082 = vmatprep.subr.mxu0 0.0
    %v2083 = vand.u32 %v90, 4294901760
    %v2084 = vsub.f32 %v90, %v2083
    %v2085 = vand.u32 %v2084, 4294901760
    %2086 = vmatpush1.msra.mxu0 %v2085
    %2087 = vmatprep.subr.mxu0 0.0
    %v2088 = vand.u32 %v91, 4294901760
    %v2089 = vsub.f32 %v91, %v2088
    %v2090 = vand.u32 %v2089, 4294901760
    %2091 = vmatpush1.msra.mxu0 %v2090
    %2092 = vmatprep.subr.mxu0 0.0
    %v2093 = vand.u32 %v92, 4294901760
    %v2094 = vsub.f32 %v92, %v2093
    %v2095 = vand.u32 %v2094, 4294901760
    %2096 = vmatpush1.msra.mxu0 %v2095
    %2097 = vmatprep.subr.mxu0 0.0
    %v2098 = vand.u32 %v93, 4294901760
    %v2099 = vsub.f32 %v93, %v2098
    %v2100 = vand.u32 %v2099, 4294901760
    %2101 = vmatpush1.msra.mxu0 %v2100
    %2102 = vmatprep.subr.mxu0 0.0
    %v2103 = vand.u32 %v94, 4294901760
    %v2104 = vsub.f32 %v94, %v2103
    %v2105 = vand.u32 %v2104, 4294901760
    %2106 = vmatpush1.msra.mxu0 %v2105
    %2107 = vmatprep.subr.mxu0 0.0
    %v2108 = vand.u32 %v95, 4294901760
    %v2109 = vsub.f32 %v95, %v2108
    %v2110 = vand.u32 %v2109, 4294901760
    %2111 = vmatpush1.msra.mxu0 %v2110
    %2112 = vmatprep.subr.mxu0 0.0
    %v2113 = vand.u32 %v96, 4294901760
    %v2114 = vsub.f32 %v96, %v2113
    %v2115 = vand.u32 %v2114, 4294901760
    %2116 = vmatpush1.msra.mxu0 %v2115
    %2117 = vmatprep.subr.mxu0 0.0
    %v2118 = vand.u32 %v97, 4294901760
    %v2119 = vsub.f32 %v97, %v2118
    %v2120 = vand.u32 %v2119, 4294901760
    %2121 = vmatpush1.msra.mxu0 %v2120
    %2122 = vmatprep.subr.mxu0 0.0
    %v2123 = vand.u32 %v98, 4294901760
    %v2124 = vsub.f32 %v98, %v2123
    %v2125 = vand.u32 %v2124, 4294901760
    %2126 = vmatpush1.msra.mxu0 %v2125
    %2127 = vmatprep.subr.mxu0 0.0
    %v2128 = vand.u32 %v99, 4294901760
    %v2129 = vsub.f32 %v99, %v2128
    %v2130 = vand.u32 %v2129, 4294901760
    %2131 = vmatpush1.msra.mxu0 %v2130
    %2132 = vmatprep.subr.mxu0 0.0
    %v2133 = vand.u32 %v100, 4294901760
    %v2134 = vsub.f32 %v100, %v2133
    %v2135 = vand.u32 %v2134, 4294901760
    %2136 = vmatpush1.msra.mxu0 %v2135
    %2137 = vmatprep.subr.mxu0 0.0
    %v2138 = vand.u32 %v101, 4294901760
    %v2139 = vsub.f32 %v101, %v2138
    %v2140 = vand.u32 %v2139, 4294901760
    %2141 = vmatpush1.msra.mxu0 %v2140
    %2142 = vmatprep.subr.mxu0 0.0
    %v2143 = vand.u32 %v102, 4294901760
    %v2144 = vsub.f32 %v102, %v2143
    %v2145 = vand.u32 %v2144, 4294901760
    %2146 = vmatpush1.msra.mxu0 %v2145
    %2147 = vmatprep.subr.mxu0 0.0
    %2148 = vmatpush1.msra.mxu0 0.0
    %2149 = vmatprep.subr.mxu0 0.0
    %2150 = vmatpush1.msra.mxu0 0.0
    %2151 = vmatprep.subr.mxu0 0.0
    %2152 = vmatpush1.msra.mxu0 0.0
    %2153 = vmatprep.subr.mxu0 0.0
    %2154 = vmatpush1.msra.mxu0 0.0
    %2155 = vmatprep.subr.mxu0 0.0
    %2156 = vmatpush1.msra.mxu0 0.0
    %2157 = vmatprep.subr.mxu0 0.0
    %2158 = vmatpush1.msra.mxu0 0.0
    %2159 = vmatprep.subr.mxu0 0.0
    %2160 = vmatpush1.msra.mxu0 0.0
    %2161 = vmatprep.subr.mxu0 0.0
    %2162 = vmatpush1.msra.mxu0 0.0
    %v2163 = vand.u32 %v112, 4294901760
    %2164 = vmatprep.mubr.f32.mxu0 %v2163
    %v2165 = vand.u32 %v15, 4294901760
    %2166 = vmatmul.mubr.f32.gmra.mrb[0].mxu0 %v2165
    %v2167 = vpop.f32.mrb[0].mxu0
    %v2168 = vadd.f32 %v1683, %v2167
    %v2169 = vpop.f32.mrb[0].mxu0
    %v2170 = vand.u32 %v115, 4294901760
    %2171 = vmatprep.mubr.f32.mxu0 %v2170
    %v2172 = vand.u32 %v17, 4294901760
    %2173 = vmatmul.mubr.f32.gmra.mrb[0].mxu0 %v2172
    %v2174 = vpop.f32.mrb[0].mxu0
    %v2175 = vadd.f32 %v1694, %v2174
    %v2176 = vpop.f32.mrb[0].mxu0
    %v2177 = vand.u32 %v118, 4294901760
    %2178 = vmatprep.mubr.f32.mxu0 %v2177
    %v2179 = vand.u32 %v19, 4294901760
    %2180 = vmatmul.mubr.f32.gmra.mrb[0].mxu0 %v2179
    %v2181 = vpop.f32.mrb[0].mxu0
    %v2182 = vadd.f32 %v1705, %v2181
    %v2183 = vpop.f32.mrb[0].mxu0
    %v2184 = vand.u32 %v121, 4294901760
    %2185 = vmatprep.mubr.f32.mxu0 %v2184
    %v2186 = vand.u32 %v21, 4294901760
    %2187 = vmatmul.mubr.f32.gmra.mrb[0].mxu0 %v2186
    %v2188 = vpop.f32.mrb[0].mxu0
    %v2189 = vadd.f32 %v1716, %v2188
    %v2190 = vpop.f32.mrb[0].mxu0
    %v2191 = vand.u32 %v124, 4294901760
    %2192 = vmatprep.mubr.f32.mxu0 %v2191
    %v2193 = vand.u32 %v23, 4294901760
    %2194 = vmatmul.mubr.f32.gmra.mrb[0].mxu0 %v2193
    %v2195 = vpop.f32.mrb[0].mxu0
    %v2196 = vadd.f32 %v1727, %v2195
    %v2197 = vpop.f32.mrb[0].mxu0
    %v2198 = vand.u32 %v127, 4294901760
    %2199 = vmatprep.mubr.f32.mxu0 %v2198
    %v2200 = vand.u32 %v25, 4294901760
    %2201 = vmatmul.mubr.f32.gmra.mrb[0].mxu0 %v2200
    %v2202 = vpop.f32.mrb[0].mxu0
    %v2203 = vadd.f32 %v1738, %v2202
    %v2204 = vpop.f32.mrb[0].mxu0
    %v2205 = vand.u32 %v130, 4294901760
    %2206 = vmatprep.mubr.f32.mxu0 %v2205
    %v2207 = vand.u32 %v27, 4294901760
    %2208 = vmatmul.mubr.f32.gmra.mrb[0].mxu0 %v2207
    %v2209 = vpop.f32.mrb[0].mxu0
    %v2210 = vadd.f32 %v1749, %v2209
    %v2211 = vpop.f32.mrb[0].mxu0
    %v2212 = vand.u32 %v133, 4294901760
    %2213 = vmatprep.mubr.f32.mxu0 %v2212
    %v2214 = vand.u32 %v29, 4294901760
    %2215 = vmatmul.mubr.f32.gmra.mrb[0].mxu0 %v2214
    %v2216 = vpop.f32.mrb[0].mxu0
    %v2217 = vadd.f32 %v1760, %v2216
    %v2218 = vpop.f32.mrb[0].mxu0
    %v2219 = vand.u32 %v136, 4294901760
    %2220 = vmatprep.mubr.f32.mxu0 %v2219
    %v2221 = vand.u32 %v31, 4294901760
    %2222 = vmatmul.mubr.f32.gmra.mrb[0].mxu0 %v2221
    %v2223 = vpop.f32.mrb[0].mxu0
    %v2224 = vadd.f32 %v1771, %v2223
    %v2225 = vpop.f32.mrb[0].mxu0
    %v2226 = vand.u32 %v139, 4294901760
    %2227 = vmatprep.mubr.f32.mxu0 %v2226
    %v2228 = vand.u32 %v33, 4294901760
    %2229 = vmatmul.mubr.f32.gmra.mrb[0].mxu0 %v2228
    %v2230 = vpop.f32.mrb[0].mxu0
    %v2231 = vadd.f32 %v1782, %v2230
    %v2232 = vpop.f32.mrb[0].mxu0
    %v2233 = vand.u32 %v142, 4294901760
    %2234 = vmatprep.mubr.f32.mxu0 %v2233
    %v2235 = vand.u32 %v35, 4294901760
    %2236 = vmatmul.mubr.f32.gmra.mrb[0].mxu0 %v2235
    %v2237 = vpop.f32.mrb[0].mxu0
    %v2238 = vadd.f32 %v1793, %v2237
    %v2239 = vpop.f32.mrb[0].mxu0
    %v2240 = vand.u32 %v145, 4294901760
    %2241 = vmatprep.mubr.f32.mxu0 %v2240
    %v2242 = vand.u32 %v37, 4294901760
    %2243 = vmatmul.mubr.f32.gmra.mrb[0].mxu0 %v2242
    %v2244 = vpop.f32.mrb[0].mxu0
    %v2245 = vadd.f32 %v1804, %v2244
    %v2246 = vpop.f32.mrb[0].mxu0
    %v2247 = vand.u32 %v148, 4294901760
    %2248 = vmatprep.mubr.f32.mxu0 %v2247
    %v2249 = vand.u32 %v39, 4294901760
    %2250 = vmatmul.mubr.f32.gmra.mrb[0].mxu0 %v2249
    %v2251 = vpop.f32.mrb[0].mxu0
    %v2252 = vadd.f32 %v1815, %v2251
    %v2253 = vpop.f32.mrb[0].mxu0
    %v2254 = vand.u32 %v151, 4294901760
    %2255 = vmatprep.mubr.f32.mxu0 %v2254
    %v2256 = vand.u32 %v41, 4294901760
    %2257 = vmatmul.mubr.f32.gmra.mrb[0].mxu0 %v2256
    %v2258 = vpop.f32.mrb[0].mxu0
    %v2259 = vadd.f32 %v1826, %v2258
    %v2260 = vpop.f32.mrb[0].mxu0
    %v2261 = vand.u32 %v154, 4294901760
    %2262 = vmatprep.mubr.f32.mxu0 %v2261
    %v2263 = vand.u32 %v43, 4294901760
    %2264 = vmatmul.mubr.f32.gmra.mrb[0].mxu0 %v2263
    %v2265 = vpop.f32.mrb[0].mxu0
    %v2266 = vadd.f32 %v1837, %v2265
    %v2267 = vpop.f32.mrb[0].mxu0
    %v2268 = vand.u32 %v157, 4294901760
    %2269 = vmatprep.mubr.f32.mxu0 %v2268
    %v2270 = vand.u32 %v45, 4294901760
    %2271 = vmatmul.mubr.f32.gmra.mrb[0].mxu0 %v2270
    %v2272 = vpop.f32.mrb[0].mxu0
    %v2273 = vadd.f32 %v1848, %v2272
    %v2274 = vpop.f32.mrb[0].mxu0
    %v2275 = vand.u32 %v160, 4294901760
    %2276 = vmatprep.mubr.f32.mxu0 %v2275
    %v2277 = vand.u32 %v47, 4294901760
    %2278 = vmatmul.mubr.f32.gmra.mrb[0].mxu0 %v2277
    %v2279 = vpop.f32.mrb[0].mxu0
    %v2280 = vadd.f32 %v1859, %v2279
    %v2281 = vpop.f32.mrb[0].mxu0
    %v2282 = vand.u32 %v163, 4294901760
    %2283 = vmatprep.mubr.f32.mxu0 %v2282
    %v2284 = vand.u32 %v49, 4294901760
    %2285 = vmatmul.mubr.f32.gmra.mrb[0].mxu0 %v2284
    %v2286 = vpop.f32.mrb[0].mxu0
    %v2287 = vadd.f32 %v1870, %v2286
    %v2288 = vpop.f32.mrb[0].mxu0
    %v2289 = vand.u32 %v166, 4294901760
    %2290 = vmatprep.mubr.f32.mxu0 %v2289
    %v2291 = vand.u32 %v51, 4294901760
    %2292 = vmatmul.mubr.f32.gmra.mrb[0].mxu0 %v2291
    %v2293 = vpop.f32.mrb[0].mxu0
    %v2294 = vadd.f32 %v1881, %v2293
    %v2295 = vpop.f32.mrb[0].mxu0
    %v2296 = vand.u32 %v169, 4294901760
    %2297 = vmatprep.mubr.f32.mxu0 %v2296
    %v2298 = vand.u32 %v53, 4294901760
    %2299 = vmatmul.mubr.f32.gmra.mrb[0].mxu0 %v2298
    %v2300 = vpop.f32.mrb[0].mxu0
    %v2301 = vadd.f32 %v1892, %v2300
    %v2302 = vpop.f32.mrb[0].mxu0
    %v2303 = vand.u32 %v172, 4294901760
    %2304 = vmatprep.mubr.f32.mxu0 %v2303
    %v2305 = vand.u32 %v55, 4294901760
    %2306 = vmatmul.mubr.f32.gmra.mrb[0].mxu0 %v2305
    %v2307 = vpop.f32.mrb[0].mxu0
    %v2308 = vadd.f32 %v1903, %v2307
    %v2309 = vpop.f32.mrb[0].mxu0
    %v2310 = vand.u32 %v175, 4294901760
    %2311 = vmatprep.mubr.f32.mxu0 %v2310
    %v2312 = vand.u32 %v57, 4294901760
    %2313 = vmatmul.mubr.f32.gmra.mrb[0].mxu0 %v2312
    %v2314 = vpop.f32.mrb[0].mxu0
    %v2315 = vadd.f32 %v1914, %v2314
    %v2316 = vpop.f32.mrb[0].mxu0
    %v2317 = vand.u32 %v178, 4294901760
    %2318 = vmatprep.mubr.f32.mxu0 %v2317
    %v2319 = vand.u32 %v59, 4294901760
    %2320 = vmatmul.mubr.f32.gmra.mrb[0].mxu0 %v2319
    %v2321 = vpop.f32.mrb[0].mxu0
    %v2322 = vadd.f32 %v1925, %v2321
    %v2323 = vpop.f32.mrb[0].mxu0
    %v2324 = vand.u32 %v181, 4294901760
    %2325 = vmatprep.mubr.f32.mxu0 %v2324
    %v2326 = vand.u32 %v61, 4294901760
    %2327 = vmatmul.mubr.f32.gmra.mrb[0].mxu0 %v2326
    %v2328 = vpop.f32.mrb[0].mxu0
    %v2329 = vadd.f32 %v1936, %v2328
    %v2330 = vpop.f32.mrb[0].mxu0
    %v2331 = vand.u32 %v184, 4294901760
    %2332 = vmatprep.mubr.f32.mxu0 %v2331
    %v2333 = vand.u32 %v63, 4294901760
    %2334 = vmatmul.mubr.f32.gmra.mrb[0].mxu0 %v2333
    %v2335 = vpop.f32.mrb[0].mxu0
    %v2336 = vadd.f32 %v1947, %v2335
    %v2337 = vpop.f32.mrb[0].mxu0
    %v2338 = vand.u32 %v187, 4294901760
    %2339 = vmatprep.mubr.f32.mxu0 %v2338
    %v2340 = vand.u32 %v65, 4294901760
    %2341 = vmatmul.mubr.f32.gmra.mrb[0].mxu0 %v2340
    %v2342 = vpop.f32.mrb[0].mxu0
    %v2343 = vadd.f32 %v1958, %v2342
    %v2344 = vpop.f32.mrb[0].mxu0
    %v2345 = vand.u32 %v190, 4294901760
    %2346 = vmatprep.mubr.f32.mxu0 %v2345
    %v2347 = vand.u32 %v67, 4294901760
    %2348 = vmatmul.mubr.f32.gmra.mrb[0].mxu0 %v2347
    %v2349 = vpop.f32.mrb[0].mxu0
    %v2350 = vadd.f32 %v1969, %v2349
    %v2351 = vpop.f32.mrb[0].mxu0
    %v2352 = vand.u32 %v193, 4294901760
    %2353 = vmatprep.mubr.f32.mxu0 %v2352
    %v2354 = vand.u32 %v69, 4294901760
    %2355 = vmatmul.mubr.f32.gmra.mrb[0].mxu0 %v2354
    %v2356 = vpop.f32.mrb[0].mxu0
    %v2357 = vadd.f32 %v1980, %v2356
    %v2358 = vpop.f32.mrb[0].mxu0
    %v2359 = vand.u32 %v196, 4294901760
    %2360 = vmatprep.mubr.f32.mxu0 %v2359
    %v2361 = vand.u32 %v71, 4294901760
    %2362 = vmatmul.mubr.f32.gmra.mrb[0].mxu0 %v2361
    %v2363 = vpop.f32.mrb[0].mxu0
    %v2364 = vadd.f32 %v1991, %v2363
    %v2365 = vpop.f32.mrb[0].mxu0
    %v2366 = vand.u32 %v199, 4294901760
    %2367 = vmatprep.mubr.f32.mxu0 %v2366
    %v2368 = vand.u32 %v73, 4294901760
    %2369 = vmatmul.mubr.f32.gmra.mrb[0].mxu0 %v2368
    %v2370 = vpop.f32.mrb[0].mxu0
    %v2371 = vadd.f32 %v2002, %v2370
    %v2372 = vpop.f32.mrb[0].mxu0
    %v2373 = vand.u32 %v202, 4294901760
    %2374 = vmatprep.mubr.f32.mxu0 %v2373
    %v2375 = vand.u32 %v75, 4294901760
    %2376 = vmatmul.mubr.f32.gmra.mrb[0].mxu0 %v2375
    %v2377 = vpop.f32.mrb[0].mxu0
    %v2378 = vadd.f32 %v2013, %v2377
    %v2379 = vpop.f32.mrb[0].mxu0
    %v2380 = vand.u32 %v205, 4294901760
    %2381 = vmatprep.mubr.f32.mxu0 %v2380
    %v2382 = vand.u32 %v77, 4294901760
    %2383 = vmatmul.mubr.f32.gmra.mrb[0].mxu0 %v2382
    %v2384 = vpop.f32.mrb[0].mxu0
    %v2385 = vadd.f32 %v2024, %v2384
    %v2386 = vpop.f32.mrb[0].mxu0
    %2387 = vdwg.mxu0
    %2388 = vmatprep.subr.mxu0 0.0
    %v2389 = vand.u32 %v79, 4294901760
    %2390 = vmatpush1.msra.mxu0 %v2389
    %2391 = vmatprep.subr.mxu0 0.0
    %v2392 = vand.u32 %v80, 4294901760
    %2393 = vmatpush1.msra.mxu0 %v2392
    %2394 = vmatprep.subr.mxu0 0.0
    %v2395 = vand.u32 %v81, 4294901760
    %2396 = vmatpush1.msra.mxu0 %v2395
    %2397 = vmatprep.subr.mxu0 0.0
    %v2398 = vand.u32 %v82, 4294901760
    %2399 = vmatpush1.msra.mxu0 %v2398
    %2400 = vmatprep.subr.mxu0 0.0
    %v2401 = vand.u32 %v83, 4294901760
    %2402 = vmatpush1.msra.mxu0 %v2401
    %2403 = vmatprep.subr.mxu0 0.0
    %v2404 = vand.u32 %v84, 4294901760
    %2405 = vmatpush1.msra.mxu0 %v2404
    %2406 = vmatprep.subr.mxu0 0.0
    %v2407 = vand.u32 %v85, 4294901760
    %2408 = vmatpush1.msra.mxu0 %v2407
    %2409 = vmatprep.subr.mxu0 0.0
    %v2410 = vand.u32 %v86, 4294901760
    %2411 = vmatpush1.msra.mxu0 %v2410
    %2412 = vmatprep.subr.mxu0 0.0
    %v2413 = vand.u32 %v87, 4294901760
    %2414 = vmatpush1.msra.mxu0 %v2413
    %2415 = vmatprep.subr.mxu0 0.0
    %v2416 = vand.u32 %v88, 4294901760
    %2417 = vmatpush1.msra.mxu0 %v2416
    %2418 = vmatprep.subr.mxu0 0.0
    %v2419 = vand.u32 %v89, 4294901760
    %2420 = vmatpush1.msra.mxu0 %v2419
    %2421 = vmatprep.subr.mxu0 0.0
    %v2422 = vand.u32 %v90, 4294901760
    %2423 = vmatpush1.msra.mxu0 %v2422
    %2424 = vmatprep.subr.mxu0 0.0
    %v2425 = vand.u32 %v91, 4294901760
    %2426 = vmatpush1.msra.mxu0 %v2425
    %2427 = vmatprep.subr.mxu0 0.0
    %v2428 = vand.u32 %v92, 4294901760
    %2429 = vmatpush1.msra.mxu0 %v2428
    %2430 = vmatprep.subr.mxu0 0.0
    %v2431 = vand.u32 %v93, 4294901760
    %2432 = vmatpush1.msra.mxu0 %v2431
    %2433 = vmatprep.subr.mxu0 0.0
    %v2434 = vand.u32 %v94, 4294901760
    %2435 = vmatpush1.msra.mxu0 %v2434
    %2436 = vmatprep.subr.mxu0 0.0
    %v2437 = vand.u32 %v95, 4294901760
    %2438 = vmatpush1.msra.mxu0 %v2437
    %2439 = vmatprep.subr.mxu0 0.0
    %v2440 = vand.u32 %v96, 4294901760
    %2441 = vmatpush1.msra.mxu0 %v2440
    %2442 = vmatprep.subr.mxu0 0.0
    %v2443 = vand.u32 %v97, 4294901760
    %2444 = vmatpush1.msra.mxu0 %v2443
    %2445 = vmatprep.subr.mxu0 0.0
    %v2446 = vand.u32 %v98, 4294901760
    %2447 = vmatpush1.msra.mxu0 %v2446
    %2448 = vmatprep.subr.mxu0 0.0
    %v2449 = vand.u32 %v99, 4294901760
    %2450 = vmatpush1.msra.mxu0 %v2449
    %2451 = vmatprep.subr.mxu0 0.0
    %v2452 = vand.u32 %v100, 4294901760
    %2453 = vmatpush1.msra.mxu0 %v2452
    %2454 = vmatprep.subr.mxu0 0.0
    %v2455 = vand.u32 %v101, 4294901760
    %2456 = vmatpush1.msra.mxu0 %v2455
    %2457 = vmatprep.subr.mxu0 0.0
    %v2458 = vand.u32 %v102, 4294901760
    %2459 = vmatpush1.msra.mxu0 %v2458
    %2460 = vmatprep.subr.mxu0 0.0
    %2461 = vmatpush1.msra.mxu0 0.0
    %2462 = vmatprep.subr.mxu0 0.0
    %2463 = vmatpush1.msra.mxu0 0.0
    %2464 = vmatprep.subr.mxu0 0.0
    %2465 = vmatpush1.msra.mxu0 0.0
    %2466 = vmatprep.subr.mxu0 0.0
    %2467 = vmatpush1.msra.mxu0 0.0
    %2468 = vmatprep.subr.mxu0 0.0
    %2469 = vmatpush1.msra.mxu0 0.0
    %2470 = vmatprep.subr.mxu0 0.0
    %2471 = vmatpush1.msra.mxu0 0.0
    %2472 = vmatprep.subr.mxu0 0.0
    %2473 = vmatpush1.msra.mxu0 0.0
    %2474 = vmatprep.subr.mxu0 0.0
    %2475 = vmatpush1.msra.mxu0 0.0
    %v2476 = vand.u32 %v112, 4294901760
    %2477 = vmatprep.mubr.f32.mxu0 %v2476
    %v2478 = vand.u32 %v15, 4294901760
    %2479 = vmatmul.mubr.f32.gmra.mrb[0].mxu0 %v2478
    %v2480 = vpop.f32.mrb[0].mxu0
    %v2481 = vadd.f32 %v2168, %v2480
    %v2482 = vpop.f32.mrb[0].mxu0
    %v2483 = vand.u32 %v115, 4294901760
    %2484 = vmatprep.mubr.f32.mxu0 %v2483
    %v2485 = vand.u32 %v17, 4294901760
    %2486 = vmatmul.mubr.f32.gmra.mrb[0].mxu0 %v2485
    %v2487 = vpop.f32.mrb[0].mxu0
    %v2488 = vadd.f32 %v2175, %v2487
    %v2489 = vpop.f32.mrb[0].mxu0
    %v2490 = vand.u32 %v118, 4294901760
    %2491 = vmatprep.mubr.f32.mxu0 %v2490
    %v2492 = vand.u32 %v19, 4294901760
    %2493 = vmatmul.mubr.f32.gmra.mrb[0].mxu0 %v2492
    %v2494 = vpop.f32.mrb[0].mxu0
    %v2495 = vadd.f32 %v2182, %v2494
    %v2496 = vpop.f32.mrb[0].mxu0
    %v2497 = vand.u32 %v121, 4294901760
    %2498 = vmatprep.mubr.f32.mxu0 %v2497
    %v2499 = vand.u32 %v21, 4294901760
    %2500 = vmatmul.mubr.f32.gmra.mrb[0].mxu0 %v2499
    %v2501 = vpop.f32.mrb[0].mxu0
    %v2502 = vadd.f32 %v2189, %v2501
    %v2503 = vpop.f32.mrb[0].mxu0
    %v2504 = vand.u32 %v124, 4294901760
    %2505 = vmatprep.mubr.f32.mxu0 %v2504
    %v2506 = vand.u32 %v23, 4294901760
    %2507 = vmatmul.mubr.f32.gmra.mrb[0].mxu0 %v2506
    %v2508 = vpop.f32.mrb[0].mxu0
    %v2509 = vadd.f32 %v2196, %v2508
    %v2510 = vpop.f32.mrb[0].mxu0
    %v2511 = vand.u32 %v127, 4294901760
    %2512 = vmatprep.mubr.f32.mxu0 %v2511
    %v2513 = vand.u32 %v25, 4294901760
    %2514 = vmatmul.mubr.f32.gmra.mrb[0].mxu0 %v2513
    %v2515 = vpop.f32.mrb[0].mxu0
    %v2516 = vadd.f32 %v2203, %v2515
    %v2517 = vpop.f32.mrb[0].mxu0
    %v2518 = vand.u32 %v130, 4294901760
    %2519 = vmatprep.mubr.f32.mxu0 %v2518
    %v2520 = vand.u32 %v27, 4294901760
    %2521 = vmatmul.mubr.f32.gmra.mrb[0].mxu0 %v2520
    %v2522 = vpop.f32.mrb[0].mxu0
    %v2523 = vadd.f32 %v2210, %v2522
    %v2524 = vpop.f32.mrb[0].mxu0
    %v2525 = vand.u32 %v133, 4294901760
    %2526 = vmatprep.mubr.f32.mxu0 %v2525
    %v2527 = vand.u32 %v29, 4294901760
    %2528 = vmatmul.mubr.f32.gmra.mrb[0].mxu0 %v2527
    %v2529 = vpop.f32.mrb[0].mxu0
    %v2530 = vadd.f32 %v2217, %v2529
    %v2531 = vpop.f32.mrb[0].mxu0
    %v2532 = vand.u32 %v136, 4294901760
    %2533 = vmatprep.mubr.f32.mxu0 %v2532
    %v2534 = vand.u32 %v31, 4294901760
    %2535 = vmatmul.mubr.f32.gmra.mrb[0].mxu0 %v2534
    %v2536 = vpop.f32.mrb[0].mxu0
    %v2537 = vadd.f32 %v2224, %v2536
    %v2538 = vpop.f32.mrb[0].mxu0
    %v2539 = vand.u32 %v139, 4294901760
    %2540 = vmatprep.mubr.f32.mxu0 %v2539
    %v2541 = vand.u32 %v33, 4294901760
    %2542 = vmatmul.mubr.f32.gmra.mrb[0].mxu0 %v2541
    %v2543 = vpop.f32.mrb[0].mxu0
    %v2544 = vadd.f32 %v2231, %v2543
    %v2545 = vpop.f32.mrb[0].mxu0
    %v2546 = vand.u32 %v142, 4294901760
    %2547 = vmatprep.mubr.f32.mxu0 %v2546
    %v2548 = vand.u32 %v35, 4294901760
    %2549 = vmatmul.mubr.f32.gmra.mrb[0].mxu0 %v2548
    %v2550 = vpop.f32.mrb[0].mxu0
    %v2551 = vadd.f32 %v2238, %v2550
    %v2552 = vpop.f32.mrb[0].mxu0
    %v2553 = vand.u32 %v145, 4294901760
    %2554 = vmatprep.mubr.f32.mxu0 %v2553
    %v2555 = vand.u32 %v37, 4294901760
    %2556 = vmatmul.mubr.f32.gmra.mrb[0].mxu0 %v2555
    %v2557 = vpop.f32.mrb[0].mxu0
    %v2558 = vadd.f32 %v2245, %v2557
    %v2559 = vpop.f32.mrb[0].mxu0
    %v2560 = vand.u32 %v148, 4294901760
    %2561 = vmatprep.mubr.f32.mxu0 %v2560
    %v2562 = vand.u32 %v39, 4294901760
    %2563 = vmatmul.mubr.f32.gmra.mrb[0].mxu0 %v2562
    %v2564 = vpop.f32.mrb[0].mxu0
    %v2565 = vadd.f32 %v2252, %v2564
    %v2566 = vpop.f32.mrb[0].mxu0
    %v2567 = vand.u32 %v151, 4294901760
    %2568 = vmatprep.mubr.f32.mxu0 %v2567
    %v2569 = vand.u32 %v41, 4294901760
    %2570 = vmatmul.mubr.f32.gmra.mrb[0].mxu0 %v2569
    %v2571 = vpop.f32.mrb[0].mxu0
    %v2572 = vadd.f32 %v2259, %v2571
    %v2573 = vpop.f32.mrb[0].mxu0
    %v2574 = vand.u32 %v154, 4294901760
    %2575 = vmatprep.mubr.f32.mxu0 %v2574
    %v2576 = vand.u32 %v43, 4294901760
    %2577 = vmatmul.mubr.f32.gmra.mrb[0].mxu0 %v2576
    %v2578 = vpop.f32.mrb[0].mxu0
    %v2579 = vadd.f32 %v2266, %v2578
    %v2580 = vpop.f32.mrb[0].mxu0
    %v2581 = vand.u32 %v157, 4294901760
    %2582 = vmatprep.mubr.f32.mxu0 %v2581
    %v2583 = vand.u32 %v45, 4294901760
    %2584 = vmatmul.mubr.f32.gmra.mrb[0].mxu0 %v2583
    %v2585 = vpop.f32.mrb[0].mxu0
    %v2586 = vadd.f32 %v2273, %v2585
    %v2587 = vpop.f32.mrb[0].mxu0
    %v2588 = vand.u32 %v160, 4294901760
    %2589 = vmatprep.mubr.f32.mxu0 %v2588
    %v2590 = vand.u32 %v47, 4294901760
    %2591 = vmatmul.mubr.f32.gmra.mrb[0].mxu0 %v2590
    %v2592 = vpop.f32.mrb[0].mxu0
    %v2593 = vadd.f32 %v2280, %v2592
    %v2594 = vpop.f32.mrb[0].mxu0
    %v2595 = vand.u32 %v163, 4294901760
    %2596 = vmatprep.mubr.f32.mxu0 %v2595
    %v2597 = vand.u32 %v49, 4294901760
    %2598 = vmatmul.mubr.f32.gmra.mrb[0].mxu0 %v2597
    %v2599 = vpop.f32.mrb[0].mxu0
    %v2600 = vadd.f32 %v2287, %v2599
    %v2601 = vpop.f32.mrb[0].mxu0
    %v2602 = vand.u32 %v166, 4294901760
    %2603 = vmatprep.mubr.f32.mxu0 %v2602
    %v2604 = vand.u32 %v51, 4294901760
    %2605 = vmatmul.mubr.f32.gmra.mrb[0].mxu0 %v2604
    %v2606 = vpop.f32.mrb[0].mxu0
    %v2607 = vadd.f32 %v2294, %v2606
    %v2608 = vpop.f32.mrb[0].mxu0
    %v2609 = vand.u32 %v169, 4294901760
    %2610 = vmatprep.mubr.f32.mxu0 %v2609
    %v2611 = vand.u32 %v53, 4294901760
    %2612 = vmatmul.mubr.f32.gmra.mrb[0].mxu0 %v2611
    %v2613 = vpop.f32.mrb[0].mxu0
    %v2614 = vadd.f32 %v2301, %v2613
    %v2615 = vpop.f32.mrb[0].mxu0
    %v2616 = vand.u32 %v172, 4294901760
    %2617 = vmatprep.mubr.f32.mxu0 %v2616
    %v2618 = vand.u32 %v55, 4294901760
    %2619 = vmatmul.mubr.f32.gmra.mrb[0].mxu0 %v2618
    %v2620 = vpop.f32.mrb[0].mxu0
    %v2621 = vadd.f32 %v2308, %v2620
    %v2622 = vpop.f32.mrb[0].mxu0
    %v2623 = vand.u32 %v175, 4294901760
    %2624 = vmatprep.mubr.f32.mxu0 %v2623
    %v2625 = vand.u32 %v57, 4294901760
    %2626 = vmatmul.mubr.f32.gmra.mrb[0].mxu0 %v2625
    %v2627 = vpop.f32.mrb[0].mxu0
    %v2628 = vadd.f32 %v2315, %v2627
    %v2629 = vpop.f32.mrb[0].mxu0
    %v2630 = vand.u32 %v178, 4294901760
    %2631 = vmatprep.mubr.f32.mxu0 %v2630
    %v2632 = vand.u32 %v59, 4294901760
    %2633 = vmatmul.mubr.f32.gmra.mrb[0].mxu0 %v2632
    %v2634 = vpop.f32.mrb[0].mxu0
    %v2635 = vadd.f32 %v2322, %v2634
    %v2636 = vpop.f32.mrb[0].mxu0
    %v2637 = vand.u32 %v181, 4294901760
    %2638 = vmatprep.mubr.f32.mxu0 %v2637
    %v2639 = vand.u32 %v61, 4294901760
    %2640 = vmatmul.mubr.f32.gmra.mrb[0].mxu0 %v2639
    %v2641 = vpop.f32.mrb[0].mxu0
    %v2642 = vadd.f32 %v2329, %v2641
    %v2643 = vpop.f32.mrb[0].mxu0
    %v2644 = vand.u32 %v184, 4294901760
    %2645 = vmatprep.mubr.f32.mxu0 %v2644
    %v2646 = vand.u32 %v63, 4294901760
    %2647 = vmatmul.mubr.f32.gmra.mrb[0].mxu0 %v2646
    %v2648 = vpop.f32.mrb[0].mxu0
    %v2649 = vadd.f32 %v2336, %v2648
    %v2650 = vpop.f32.mrb[0].mxu0
    %v2651 = vand.u32 %v187, 4294901760
    %2652 = vmatprep.mubr.f32.mxu0 %v2651
    %v2653 = vand.u32 %v65, 4294901760
    %2654 = vmatmul.mubr.f32.gmra.mrb[0].mxu0 %v2653
    %v2655 = vpop.f32.mrb[0].mxu0
    %v2656 = vadd.f32 %v2343, %v2655
    %v2657 = vpop.f32.mrb[0].mxu0
    %v2658 = vand.u32 %v190, 4294901760
    %2659 = vmatprep.mubr.f32.mxu0 %v2658
    %v2660 = vand.u32 %v67, 4294901760
    %2661 = vmatmul.mubr.f32.gmra.mrb[0].mxu0 %v2660
    %v2662 = vpop.f32.mrb[0].mxu0
    %v2663 = vadd.f32 %v2350, %v2662
    %v2664 = vpop.f32.mrb[0].mxu0
    %v2665 = vand.u32 %v193, 4294901760
    %2666 = vmatprep.mubr.f32.mxu0 %v2665
    %v2667 = vand.u32 %v69, 4294901760
    %2668 = vmatmul.mubr.f32.gmra.mrb[0].mxu0 %v2667
    %v2669 = vpop.f32.mrb[0].mxu0
    %v2670 = vadd.f32 %v2357, %v2669
    %v2671 = vpop.f32.mrb[0].mxu0
    %v2672 = vand.u32 %v196, 4294901760
    %2673 = vmatprep.mubr.f32.mxu0 %v2672
    %v2674 = vand.u32 %v71, 4294901760
    %2675 = vmatmul.mubr.f32.gmra.mrb[0].mxu0 %v2674
    %v2676 = vpop.f32.mrb[0].mxu0
    %v2677 = vadd.f32 %v2364, %v2676
    %v2678 = vpop.f32.mrb[0].mxu0
    %v2679 = vand.u32 %v199, 4294901760
    %2680 = vmatprep.mubr.f32.mxu0 %v2679
    %v2681 = vand.u32 %v73, 4294901760
    %2682 = vmatmul.mubr.f32.gmra.mrb[0].mxu0 %v2681
    %v2683 = vpop.f32.mrb[0].mxu0
    %v2684 = vadd.f32 %v2371, %v2683
    %v2685 = vpop.f32.mrb[0].mxu0
    %v2686 = vand.u32 %v202, 4294901760
    %2687 = vmatprep.mubr.f32.mxu0 %v2686
    %v2688 = vand.u32 %v75, 4294901760
    %2689 = vmatmul.mubr.f32.gmra.mrb[0].mxu0 %v2688
    %v2690 = vpop.f32.mrb[0].mxu0
    %v2691 = vadd.f32 %v2378, %v2690
    %v2692 = vpop.f32.mrb[0].mxu0
    %v2693 = vand.u32 %v205, 4294901760
    %2694 = vmatprep.mubr.f32.mxu0 %v2693
    %v2695 = vand.u32 %v77, 4294901760
    %2696 = vmatmul.mubr.f32.gmra.mrb[0].mxu0 %v2695
    %v2697 = vpop.f32.mrb[0].mxu0
    %v2698 = vadd.f32 %v2385, %v2697
    %v2699 = vpop.f32.mrb[0].mxu0
    %2700 = vdwg.mxu0
    %2701 = vst [vmem:[#allocation2] sm:$0xff] %v2481
    %2702 = vst [vmem:[#allocation2 + $0x8] sm:$0xff] %v2488
    %2703 = vst [vmem:[#allocation2 + $0x10] sm:$0xff] %v2495
    %2704 = vst [vmem:[#allocation2 + $0x18] sm:$0xff] %v2502
    %2705 = vst [vmem:[#allocation2 + $0x20] sm:$0xff] %v2509
    %2706 = vst [vmem:[#allocation2 + $0x28] sm:$0xff] %v2516
    %2707 = vst [vmem:[#allocation2 + $0x30] sm:$0xff] %v2523
    %2708 = vst [vmem:[#allocation2 + $0x38] sm:$0xff] %v2530
    %2709 = vst [vmem:[#allocation2 + $0x40] sm:$0xff] %v2537
    %2710 = vst [vmem:[#allocation2 + $0x48] sm:$0xff] %v2544
    %2711 = vst [vmem:[#allocation2 + $0x50] sm:$0xff] %v2551
    %2712 = vst [vmem:[#allocation2 + $0x58] sm:$0xff] %v2558
    %2713 = vst [vmem:[#allocation2 + $0x60] sm:$0xff] %v2565
    %2714 = vst [vmem:[#allocation2 + $0x68] sm:$0xff] %v2572
    %2715 = vst [vmem:[#allocation2 + $0x70] sm:$0xff] %v2579
    %2716 = vst [vmem:[#allocation2 + $0x78] sm:$0xff] %v2586
    %2717 = vst [vmem:[#allocation2 + $0x80] sm:$0xff] %v2593
    %2718 = vst [vmem:[#allocation2 + $0x88] sm:$0xff] %v2600
    %2719 = vst [vmem:[#allocation2 + $0x90] sm:$0xff] %v2607
    %2720 = vst [vmem:[#allocation2 + $0x98] sm:$0xff] %v2614
    %2721 = vst [vmem:[#allocation2 + $0xa0] sm:$0xff] %v2621
    %2722 = vst [vmem:[#allocation2 + $0xa8] sm:$0xff] %v2628
    %2723 = vst [vmem:[#allocation2 + $0xb0] sm:$0xff] %v2635
    %2724 = vst [vmem:[#allocation2 + $0xb8] sm:$0xff] %v2642
    %2725 = vst [vmem:[#allocation2 + $0xc0] sm:$0xff] %v2649
    %2726 = vst [vmem:[#allocation2 + $0xc8] sm:$0xff] %v2656
    %2727 = vst [vmem:[#allocation2 + $0xd0] sm:$0xff] %v2663
    %2728 = vst [vmem:[#allocation2 + $0xd8] sm:$0xff] %v2670
    %2729 = vst [vmem:[#allocation2 + $0xe0] sm:$0xff] %v2677
    %2730 = vst [vmem:[#allocation2 + $0xe8] sm:$0xff] %v2684
    %2731 = vst [vmem:[#allocation2 + $0xf0] sm:$0xff] %v2691
    %2732 = vst [vmem:[#allocation2 + $0xf8] sm:$0xff] %v2698
    // Predicated region
    $region14: #{tpu_custom_call.1} parent=1 // pred_check
      _
    $region15: #{tpu_custom_call.1} parent=1 // pred_check_branch
      %2734 = sbr.rel (0) target = $region17
    $region16: #{tpu_custom_call.1} parent=1 // pred_region
      %s2736 = ssub.s32 4096, 4096
      %2737 = vsyncadd [#allocation3], %s2736
      %s2738 = sshll.u32 [#allocation2], 4
      %s2739 = int_to_ptr.vmem [resolvable:$true] %s2738
      %2744 = dma.vmem_to_hbm [thread:$0]  %s2739, 4096, %s3, [#allocation3], 128, 128, 8
    $region17: #{tpu_custom_call.1} parent=1 // pred_fallthru
      _
    // Predicated region
    $region18: #{tpu_custom_call.1} parent=1 // pred_check
      _
    $region19: #{tpu_custom_call.1} parent=1 // pred_check_branch
      %2746 = sbr.rel (0) target = $region21
    $region20: #{tpu_custom_call.1} parent=1 // pred_region
      %2747 = dma.done [#allocation3], 4096
    $region21: #{tpu_custom_call.1} parent=1 // pred_fallthru
      _
    %2748 = vsyncpa [#allocation3], 1

</llo_original>
